<compile_context>
chip_gen: v7x
topology: tpu7x:2x2x1
jax: 0.10.0
libtpu: 0.0.40
codegen_flags: <defaults>
</compile_context>

<pallas_src>
import functools

import jax
import jax.numpy as jnp
from jax.experimental import pallas as pl
from jax.experimental.pallas import tpu as pltpu

LANES = 128
BLOCK_ROWS = 4096     # max rows per grid step: (4096,128) f32 = 2 MiB block
CHUNK_ROWS = 512      # inner streaming chunk; bounds live vregs inside the tile
MIN_TILES = 8         # keep >= ~8 grid steps when possible (v7x megacore balance)
SMALL_N = 1 << 15     # below this, pure-jnp fast path


def _entropy(x):
    x = x.astype(jnp.float32)
    return -(x * jnp.log(x + 1e-20) + (1.0 - x) * jnp.log(1.0 - x + 1e-20))


def _chunk_partial(x_ref, start):
    """Binary entropy of one (CHUNK_ROWS, 128) chunk, reduced to (8, 128)."""
    loss = _entropy(x_ref[pl.ds(start, CHUNK_ROWS), :])
    return jnp.sum(loss.reshape(CHUNK_ROWS // 8, 8, LANES), axis=0)


def _bq_kernel_aligned(x_ref, out_ref, *, n_chunks):
    """All tiles are full: no masking anywhere, identical work per grid step."""
    def body(c, acc):
        start = pl.multiple_of(c * CHUNK_ROWS, CHUNK_ROWS)
        return acc + _chunk_partial(x_ref, start)

    out_ref[...] = jax.lax.fori_loop(
        0, n_chunks, body, jnp.zeros((8, LANES), jnp.float32), unroll=True)


def _bq_kernel_tail(x_ref, out_ref, *, n_chunks, valid_rows):
    """Last tile is row-ragged: mask only there; interior tiles stay mask-free."""
    is_last = pl.program_id(0) == pl.num_programs(0) - 1

    def full_body(c, acc):
        start = pl.multiple_of(c * CHUNK_ROWS, CHUNK_ROWS)
        return acc + _chunk_partial(x_ref, start)

    @pl.when(jnp.logical_not(is_last))
    def _():
        out_ref[...] = jax.lax.fori_loop(
            0, n_chunks, full_body, jnp.zeros((8, LANES), jnp.float32),
            unroll=True)

    @pl.when(is_last)
    def _():
        def masked_body(c, acc):
            start = pl.multiple_of(c * CHUNK_ROWS, CHUNK_ROWS)
            loss = _entropy(x_ref[pl.ds(start, CHUNK_ROWS), :])
            row = start + jax.lax.broadcasted_iota(
                jnp.int32, (CHUNK_ROWS, LANES), 0)
            # select (NOT multiply-by-mask): OOB padded rows may hold NaN/Inf.
            loss = jnp.where(row < valid_rows, loss, 0.0)
            return acc + jnp.sum(loss.reshape(CHUNK_ROWS // 8, 8, LANES), axis=0)

        n_last = -(-valid_rows // CHUNK_ROWS)  # static; later chunks are all-masked
        out_ref[...] = jax.lax.fori_loop(
            0, n_last, masked_body, jnp.zeros((8, LANES), jnp.float32),
            unroll=True)


def _round_up(a, b):
    return -(-a // b) * b


def bitwise_quantization_loss(x):
    """Mean binary-entropy ('bitwise quantization') loss over all elements."""
    n_total = int(x.size)
    flat = jnp.ravel(x)

    if n_total < SMALL_N:
        # Tiny tensors: kernel launch + wrapper reduction is pure fixed overhead.
        return jnp.sum(_entropy(flat)) / jnp.float32(n_total)

    n_aligned = (n_total // LANES) * LANES
    rows = n_aligned // LANES
    slab = flat[:n_aligned].reshape(rows, LANES)   # no full-array pad copy

    # Tile size: max 4096 rows, but keep >= MIN_TILES grid steps for 2-TC chips.
    if rows >= MIN_TILES * BLOCK_ROWS:
        block_rows = BLOCK_ROWS
    else:
        block_rows = max(CHUNK_ROWS,
                         _round_up(-(-rows // MIN_TILES), CHUNK_ROWS))
    num_tiles = -(-rows // block_rows)                        # python-int cdiv
    valid_rows_last = rows - (num_tiles - 1) * block_rows     # static python int
    n_chunks = block_rows // CHUNK_ROWS

    if valid_rows_last == block_rows:
        kernel = functools.partial(_bq_kernel_aligned, n_chunks=n_chunks)
    else:
        kernel = functools.partial(_bq_kernel_tail, n_chunks=n_chunks,
                                   valid_rows=valid_rows_last)

    itemsize = jnp.dtype(x.dtype).itemsize
    cost = pl.CostEstimate(
        flops=5 * n_aligned,
        transcendentals=2 * n_aligned,
        bytes_accessed=n_aligned * itemsize + num_tiles * 8 * LANES * 4,
    )

    partials = pl.pallas_call(
        kernel,
        out_shape=jax.ShapeDtypeStruct((8 * num_tiles, LANES), jnp.float32),
        grid_spec=pltpu.PrefetchScalarGridSpec(
            num_scalar_prefetch=0,
            grid=(num_tiles,),
            in_specs=[pl.BlockSpec((block_rows, LANES), lambda i: (i, 0))],
            out_specs=pl.BlockSpec((8, LANES), lambda i: (i, 0)),
        ),
        compiler_params=pltpu.CompilerParams(
            dimension_semantics=("parallel",),   # independent tiles -> megacore
        ),
        cost_estimate=cost,
    )(slab)

    total = jnp.sum(partials)
    if n_total != n_aligned:
        # <128-element remainder handled with a tiny jnp expression (no pad copy).
        total = total + jnp.sum(_entropy(flat[n_aligned:]))
    return total / jnp.float32(n_total)


def _reference(x):
    return jnp.mean(_entropy(x))


if __name__ == "__main__":
    key = jax.random.PRNGKey(0)
    k1, k2, k3 = jax.random.split(key, 3)

    # 1) Small NCHW input (typical module use) -> small-input fast path.
    x_small = jax.random.uniform(k1, (2, 4, 16, 16), dtype=jnp.float32)
    # 2) Unaligned size -> Pallas kernel + ragged-row mask + <128-elem remainder.
    x_ragged = jax.random.uniform(k2, (4, 3, 60, 129), dtype=jnp.float32)
    # 3) Aligned multi-tile case -> specialized mask-free kernel, 8 grid steps.
    x_aligned = jax.random.uniform(k3, (2, 8, 256, 128), dtype=jnp.float32)

    for x in (x_small, x_ragged, x_aligned):
        got = bitwise_quantization_loss(x)
        jax.block_until_ready(got)
        want = _reference(x)
        assert jnp.allclose(got, want, rtol=1e-5, atol=1e-6), (x.shape, got, want)

    print("KERNEL_OK")
</pallas_src>

<mosaic_0001>
module attributes {stable_mosaic.version = 11 : i64} {
  func.func @_bq_kernel_tail(%arg0: i32, %arg1: memref<512x128xf32, #tpu.memory_space<vmem>>, %arg2: memref<8x128xf32, #tpu.memory_space<vmem>>) attributes {dimension_semantics = [#tpu.dimension_semantics<parallel>], iteration_bounds = array<i64: 2>, scalar_prefetch = 0 : i64, scratch_operands = 0 : i64, tpu.core_type = #tpu.core_type<tc>, window_params = [{transform_indices = @transform_0, window_bounds = array<i64: 512, 128>}, {transform_indices = @transform_1, window_bounds = array<i64: 8, 128>}]} {
    %c1_i32 = arith.constant 1 : i32
    %0 = arith.cmpi eq, %arg0, %c1_i32 : i32
    %true = arith.constant true
    %1 = arith.xori %0, %true : i1
    %2 = arith.extui %1 : i1 to i32
    %c0_i32 = arith.constant 0 : i32
    %3 = arith.cmpi ne, %2, %c0_i32 : i32
    scf.if %3 {
      %cst = arith.constant 0.000000e+00 : f32
      %6 = vector.broadcast %cst : f32 to vector<8x128xf32>
      %c0_i32_1 = arith.constant 0 : i32
      %c512_i32 = arith.constant 512 : i32
      %7 = arith.muli %c0_i32_1, %c512_i32 : i32
      %8 = tpu.assume_multiple %7, 512 : i32
      %9 = arith.index_cast %8 : i32 to index
      %c0 = arith.constant 0 : index
      %10 = vector.load %arg1[%9, %c0] : memref<512x128xf32, #tpu.memory_space<vmem>>, vector<512x128xf32>
      %cst_2 = arith.constant 9.99999968E-21 : f32
      %11 = vector.broadcast %cst_2 : f32 to vector<512x128xf32>
      %12 = arith.addf %10, %11 : vector<512x128xf32>
      %13 = math.log %12 : vector<512x128xf32>
      %14 = arith.mulf %10, %13 : vector<512x128xf32>
      %cst_3 = arith.constant 1.000000e+00 : f32
      %15 = vector.broadcast %cst_3 : f32 to vector<512x128xf32>
      %16 = arith.subf %15, %10 : vector<512x128xf32>
      %cst_4 = arith.constant 1.000000e+00 : f32
      %17 = vector.broadcast %cst_4 : f32 to vector<512x128xf32>
      %18 = arith.subf %17, %10 : vector<512x128xf32>
      %cst_5 = arith.constant 9.99999968E-21 : f32
      %19 = vector.broadcast %cst_5 : f32 to vector<512x128xf32>
      %20 = arith.addf %18, %19 : vector<512x128xf32>
      %21 = math.log %20 : vector<512x128xf32>
      %22 = arith.mulf %16, %21 : vector<512x128xf32>
      %23 = arith.addf %14, %22 : vector<512x128xf32>
      %cst_6 = arith.constant 0.000000e+00 : f32
      %24 = vector.broadcast %cst_6 : f32 to vector<512x128xf32>
      %25 = arith.subf %24, %23 : vector<512x128xf32>
      %26 = vector.shape_cast %25 : vector<512x128xf32> to vector<64x8x128xf32>
      %cst_7 = arith.constant dense<0.000000e+00> : vector<8x128xf32>
      %27 = vector.multi_reduction <add>, %26, %cst_7 [0] : vector<64x8x128xf32> to vector<8x128xf32>
      %28 = arith.addf %6, %27 : vector<8x128xf32>
      %c1_i32_8 = arith.constant 1 : i32
      %c0_9 = arith.constant 0 : index
      %c0_10 = arith.constant 0 : index
      %29 = vector.load %arg2[%c0_9, %c0_10] : memref<8x128xf32, #tpu.memory_space<vmem>>, vector<8x128xf32>
      tpu.vector_store %arg2[%c0_9, %c0_10], %28 {strides = array<i32>} : memref<8x128xf32, #tpu.memory_space<vmem>>, vector<8x128xf32>,
    } else {
    }
    %4 = arith.extui %0 : i1 to i32
    %c0_i32_0 = arith.constant 0 : i32
    %5 = arith.cmpi ne, %4, %c0_i32_0 : i32
    scf.if %5 {
      %cst = arith.constant 0.000000e+00 : f32
      %6 = vector.broadcast %cst : f32 to vector<8x128xf32>
      %c0_i32_1 = arith.constant 0 : i32
      %c512_i32 = arith.constant 512 : i32
      %7 = arith.muli %c0_i32_1, %c512_i32 : i32
      %8 = tpu.assume_multiple %7, 512 : i32
      %9 = arith.index_cast %8 : i32 to index
      %c0 = arith.constant 0 : index
      %10 = vector.load %arg1[%9, %c0] : memref<512x128xf32, #tpu.memory_space<vmem>>, vector<512x128xf32>
      %cst_2 = arith.constant 9.99999968E-21 : f32
      %11 = vector.broadcast %cst_2 : f32 to vector<512x128xf32>
      %12 = arith.addf %10, %11 : vector<512x128xf32>
      %13 = math.log %12 : vector<512x128xf32>
      %14 = arith.mulf %10, %13 : vector<512x128xf32>
      %cst_3 = arith.constant 1.000000e+00 : f32
      %15 = vector.broadcast %cst_3 : f32 to vector<512x128xf32>
      %16 = arith.subf %15, %10 : vector<512x128xf32>
      %cst_4 = arith.constant 1.000000e+00 : f32
      %17 = vector.broadcast %cst_4 : f32 to vector<512x128xf32>
      %18 = arith.subf %17, %10 : vector<512x128xf32>
      %cst_5 = arith.constant 9.99999968E-21 : f32
      %19 = vector.broadcast %cst_5 : f32 to vector<512x128xf32>
      %20 = arith.addf %18, %19 : vector<512x128xf32>
      %21 = math.log %20 : vector<512x128xf32>
      %22 = arith.mulf %16, %21 : vector<512x128xf32>
      %23 = arith.addf %14, %22 : vector<512x128xf32>
      %cst_6 = arith.constant 0.000000e+00 : f32
      %24 = vector.broadcast %cst_6 : f32 to vector<512x128xf32>
      %25 = arith.subf %24, %23 : vector<512x128xf32>
      %26 = tpu.iota {dimensions = array<i32: 0>} : vector<512x128xi32>
      %27 = vector.broadcast %8 : i32 to vector<512x128xi32>
      %28 = arith.addi %27, %26 : vector<512x128xi32>
      %c213_i32 = arith.constant 213 : i32
      %29 = vector.broadcast %c213_i32 : i32 to vector<512x128xi32>
      %30 = arith.cmpi slt, %28, %29 : vector<512x128xi32>
      %cst_7 = arith.constant 0.000000e+00 : f32
      %31 = vector.broadcast %cst_7 : f32 to vector<512x128xf32>
      %32 = arith.select %30, %25, %31 : vector<512x128xi1>, vector<512x128xf32>
      %33 = vector.shape_cast %32 : vector<512x128xf32> to vector<64x8x128xf32>
      %cst_8 = arith.constant dense<0.000000e+00> : vector<8x128xf32>
      %34 = vector.multi_reduction <add>, %33, %cst_8 [0] : vector<64x8x128xf32> to vector<8x128xf32>
      %35 = arith.addf %6, %34 : vector<8x128xf32>
      %c1_i32_9 = arith.constant 1 : i32
      %c0_10 = arith.constant 0 : index
      %c0_11 = arith.constant 0 : index
      %36 = vector.load %arg2[%c0_10, %c0_11] : memref<8x128xf32, #tpu.memory_space<vmem>>, vector<8x128xf32>
      tpu.vector_store %arg2[%c0_10, %c0_11], %35 {strides = array<i32>} : memref<8x128xf32, #tpu.memory_space<vmem>>, vector<8x128xf32>,
    } else {
    }
    return
  }
  func.func @transform_0(%arg0: i32) -> (i32, i32) {
    %c0_i32 = arith.constant 0 : i32
    %c0_i32_0 = arith.constant 0 : i32
    return %arg0, %c0_i32 : i32, i32
  }
  func.func @transform_1(%arg0: i32) -> (i32, i32) {
    %c0_i32 = arith.constant 0 : i32
    %c0_i32_0 = arith.constant 0 : i32
    return %arg0, %c0_i32 : i32, i32
  }
}

</mosaic_0001>

<llo_original>
// kernel: tpu_custom_call.1
$region0: #{tpu_custom_call.1}
  #allocation0 [shape = 'u32[]', space=smem, size = 0x4, offset = 0x4, fixed_abs, tag = 'smem constant byte address 0x4 - core index']
  #allocation1 [shape = 'u32[144,128]{1,0:T(1,128)}', space=vmem, size = 0x12000, scoped, tag = 'internal scratch']
  %s0 = inlined_call_operand.hbm [shape: f32[725,128], index: 0, kind: input, shape index: {}]
  %s1 = inlined_call_operand.hbm [shape: f32[16,128], index: 1, kind: output, shape index: {}]
  %s2 = sld [smem:[#allocation0]]
  $region49: #{tpu_custom_call.1} parent=0
    _
  %s4 = ssub.s32 1, %s2
  %s5 = scalar_select 0, %s4, %s2
  $region1: #{tpu_custom_call.1} parent=0
    #allocation2 [shape = 'u8[524288]{0}', space=vmem, size = 0x80000, scoped, tag = 'input window, operand 0']
    #allocation3 [shape = 's32[2]{0}', space=sflag, size = 0x8, scoped, tag = 'scoped memory for tpu_custom_call.1']
    #allocation4 [shape = 's32[2]{0}', space=sflag, size = 0x8, scoped, tag = 'scoped memory for tpu_custom_call.1']
    #allocation5 [shape = 'u8[8192]{0}', space=vmem, size = 0x2000, scoped, tag = 'output window, operand 0']
    %6 = vsyncpa [#allocation3], 0
    %s7 = scalar_lea.sflag [#allocation3], 1
    %8 = vsyncpa %s7, 0
    %9 = vsyncpa [#allocation4], 0
    %s10 = scalar_lea.sflag [#allocation4], 1
    %11 = vsyncpa %s10, 0
    loop: start=0, step=1, limit=4
    $region2: #{tpu_custom_call.1} parent=1 // loop_pre_header
      _
    $region3: #{tpu_custom_call.1} parent=1 // loop_header
      %s13 = sphi 0, %s17
      %p14 = scmp.ge.s32.totalorder %s13, 4
      %s23 = sphi 0, %s25
      %s26 = sphi 0, %s23
      %s27 = sphi 0, %s26
      %s43 = sphi 0, %s27
      %s49 = sphi 0, %s51
      %s52 = sphi 0, %s49
      %s53 = sphi 0, %s52
      %s69 = sphi 0, %s53
    $region4: #{tpu_custom_call.1} parent=1 // loop_header_branch
      %16 = sbr.rel (%p14) target = $region8
    $region5: #{tpu_custom_call.1} parent=1 // loop_body
      %s18 = ssub.s32 %s13, 1
      %s19 = ssub.s32 %s13, 2
      %s20 = sadd.s32 %s13, 1
      %s21 = ssub.s32 %s13, %s20
      %p22 = scmp.eq.s32.totalorder %s21, 0
      %s24 = sadd.s32 %s23, 1
      %s25 = scalar_select %p22, %s23, %s24
      %p28 = pneg %p22
      %p29 = scmp.eq.s32.totalorder %s13, 1
      %p30 = por %p28, %p29
      %p31 = scmp.ne.s32.totalorder %s23, %s26
      %p32 = scmp.eq.s32.totalorder %s13, 0
      %p33 = por %p31, %p32
      %p34 = scmp.ne.s32.totalorder %s23, %s26
      %p35 = scmp.eq.s32.totalorder %s18, 1
      %p36 = por %p34, %p35
      %p37 = scmp.ne.s32.totalorder %s26, %s27
      %p38 = scmp.eq.s32.totalorder %s18, 0
      %p39 = por %p37, %p38
      %p40 = scmp.ne.s32.totalorder %s26, %s27
      %p41 = scmp.eq.s32.totalorder %s19, 1
      %p42 = por %p40, %p41
      %p44 = scmp.ne.s32.totalorder %s27, %s43
      %p45 = scmp.eq.s32.totalorder %s19, 0
      %p46 = por %p44, %p45
      %s47 = ssub.s32 %s13, %s20
      %p48 = scmp.eq.s32.totalorder %s47, 0
      %s50 = sadd.s32 %s49, 1
      %s51 = scalar_select %p48, %s49, %s50
      %p54 = pneg %p48
      %p55 = scmp.eq.s32.totalorder %s13, 1
      %p56 = por %p54, %p55
      %p57 = scmp.ne.s32.totalorder %s49, %s52
      %p58 = scmp.eq.s32.totalorder %s13, 0
      %p59 = por %p57, %p58
      %p60 = scmp.ne.s32.totalorder %s49, %s52
      %p61 = scmp.eq.s32.totalorder %s18, 1
      %p62 = por %p60, %p61
      %p63 = scmp.ne.s32.totalorder %s52, %s53
      %p64 = scmp.eq.s32.totalorder %s18, 0
      %p65 = por %p63, %p64
      %p66 = scmp.ne.s32.totalorder %s52, %s53
      %p67 = scmp.eq.s32.totalorder %s19, 1
      %p68 = por %p66, %p67
      %p70 = scmp.ne.s32.totalorder %s53, %s69
      %p71 = scmp.eq.s32.totalorder %s19, 0
      %p72 = por %p70, %p71
      %p73 = scmp.le.s32.totalorder 1, %s13
      %p74 = scmp.lt.s32.totalorder %s13, 3
      %p75 = pnand %p73, %p74
      %p76 = pneg %p75
      // Predicated region
      $region9: #{tpu_custom_call.1} parent=5 // pred_check
        _
      $region10: #{tpu_custom_call.1} parent=5 // pred_check_branch
        %78 = sbr.rel (%p75) target = $region12
      $region11: #{tpu_custom_call.1} parent=5 // pred_region
        %s79 = ssub.s32 %s13, 1
      $region12: #{tpu_custom_call.1} parent=5 // pred_fallthru
        _
      %p80 = scmp.lt.s32.totalorder %s13, 2
      // Predicated region
      $region13: #{tpu_custom_call.1} parent=5 // pred_check
        %p81 = pneg %p80
      $region14: #{tpu_custom_call.1} parent=5 // pred_check_branch
        %83 = sbr.rel (%p81) target = $region16
      $region15: #{tpu_custom_call.1} parent=5 // pred_region
        // Predicated region
        $region17: #{tpu_custom_call.1} parent=15 // pred_check
          %p84 = pneg %p33
        $region18: #{tpu_custom_call.1} parent=15 // pred_check_branch
          %86 = sbr.rel (%p84) target = $region20
        $region19: #{tpu_custom_call.1} parent=15 // pred_region
          %s87 = sand.u32 %s23, 1
          %s88 = scalar_lea.sflag [#allocation3], %s87
          %s89 = sand.u32 %s23, 1
          %s90 = smul.addr %s89, 512
          %s91 = scalar_lea.vmem [#allocation2], %s90
          %s92 = smul.u32 64, %s13
          %s93 = ssub.s32 91, %s92
          %p94 = scmp.lt.s32.totalorder %s93, 64
          %s95 = scalar_select %p94, %s93, 64
          %s96 = smul.u32 128, %s95
          %s98 = ssub.s32 8192, %s96
          %99 = vsyncadd %s88, %s98
          %p100 = scmp.ne.s32.totalorder 0, %s96
          %s101 = smul.addr %s92, 128
          %s102 = scalar_lea.hbm %s0, %s101
          %s103 = smul.u32 8, %s95
          %s104 = sshll.u32 %s91, 4
          %s105 = int_to_ptr.vmem [resolvable:$true] %s104
          %s106 = sshll.u32 %s103, 4
          %110 = dma.hbm_to_vmem [thread:$0]  (%p100), %s102, %s106, %s105, %s88, 128, 128, 8
        $region20: #{tpu_custom_call.1} parent=15 // pred_fallthru
          _
      $region16: #{tpu_custom_call.1} parent=5 // pred_fallthru
        _
      %p111 = scmp.le.s32.totalorder 1, %s13
      %p112 = scmp.lt.s32.totalorder %s13, 3
      %p113 = pnand %p111, %p112
      %p114 = pneg %p113
      // Predicated region
      $region21: #{tpu_custom_call.1} parent=5 // pred_check
        _
      $region22: #{tpu_custom_call.1} parent=5 // pred_check_branch
        %116 = sbr.rel (%p113) target = $region24
      $region23: #{tpu_custom_call.1} parent=5 // pred_region
        %s117 = ssub.s32 %s13, 1
        %s118 = sand.u32 %s26, 1
        %s119 = scalar_lea.sflag [#allocation3], %s118
        %s120 = sand.u32 %s26, 1
        %s121 = smul.addr %s120, 512
        %s122 = scalar_lea.vmem [#allocation2], %s121
        // Predicated region
        $region25: #{tpu_custom_call.1} parent=23 // pred_check
          %p123 = pneg %p39
        $region26: #{tpu_custom_call.1} parent=23 // pred_check_branch
          %125 = sbr.rel (%p123) target = $region28
        $region27: #{tpu_custom_call.1} parent=23 // pred_region
          %126 = dma.done %s119, 8192
        $region28: #{tpu_custom_call.1} parent=23 // pred_fallthru
          _
        %s127 = sand.u32 %s26, 1
        %s128 = scalar_lea.sflag [#allocation3], %s127
        %s129 = sand.u32 %s26, 1
        %s130 = smul.addr %s129, 512
        %s131 = scalar_lea.vmem [#allocation2], %s130
        %p132 = pneg %p39
        %p133 = pneg %p36
        %p134 = pneg %p65
        %p135 = pneg %p62
        %s136 = sand.u32 %s52, 1
        %s137 = scalar_lea.sflag [#allocation4], %s136
        %s138 = sand.u32 %s52, 1
        %s139 = smul.addr %s138, 8
        %s140 = scalar_lea.vmem [#allocation5], %s139
        %s141 = smul.u32 64, %s18
        %s142 = ssub.s32 91, %s141
        %p143 = scmp.lt.s32.totalorder %s142, 64
        %s144 = scalar_select %p143, %s142, 64
        %s145 = smul.u32 128, %s144
        %p146 = scmp.eq.s32.totalorder %s18, 1
        %p147 = scmp.ne.s32.totalorder %s18, 1
        // Predicated region
        $region29: #{tpu_custom_call.1} parent=23 // pred_check
          %p148 = pneg %p147
        $region30: #{tpu_custom_call.1} parent=23 // pred_check_branch
          %150 = sbr.rel (%p148) target = $region32
        $region31: #{tpu_custom_call.1} parent=23 // pred_region
          %v151 = vld [vmem:[%s122] sm:$0xff]
          %v152 = vld [vmem:[%s122 + $0x8] sm:$0xff]
          %v153 = vld [vmem:[%s122 + $0x10] sm:$0xff]
          %v154 = vld [vmem:[%s122 + $0x18] sm:$0xff]
          %v155 = vld [vmem:[%s122 + $0x20] sm:$0xff]
          %v156 = vld [vmem:[%s122 + $0x28] sm:$0xff]
          %v157 = vld [vmem:[%s122 + $0x30] sm:$0xff]
          %v158 = vld [vmem:[%s122 + $0x38] sm:$0xff]
          %v159 = vld [vmem:[%s122 + $0x40] sm:$0xff]
          %v160 = vld [vmem:[%s122 + $0x48] sm:$0xff]
          %v161 = vld [vmem:[%s122 + $0x50] sm:$0xff]
          %v162 = vld [vmem:[%s122 + $0x58] sm:$0xff]
          %v163 = vld [vmem:[%s122 + $0x60] sm:$0xff]
          %v164 = vld [vmem:[%s122 + $0x68] sm:$0xff]
          %v165 = vld [vmem:[%s122 + $0x70] sm:$0xff]
          %v166 = vld [vmem:[%s122 + $0x78] sm:$0xff]
          %v167 = vld [vmem:[%s122 + $0x80] sm:$0xff]
          %v168 = vld [vmem:[%s122 + $0x88] sm:$0xff]
          %v169 = vld [vmem:[%s122 + $0x90] sm:$0xff]
          %v170 = vld [vmem:[%s122 + $0x98] sm:$0xff]
          %v171 = vld [vmem:[%s122 + $0xa0] sm:$0xff]
          %v172 = vld [vmem:[%s122 + $0xa8] sm:$0xff]
          %v173 = vld [vmem:[%s122 + $0xb0] sm:$0xff]
          %v174 = vld [vmem:[%s122 + $0xb8] sm:$0xff]
          %v175 = vld [vmem:[%s122 + $0xc0] sm:$0xff]
          %v176 = vld [vmem:[%s122 + $0xc8] sm:$0xff]
          %v177 = vld [vmem:[%s122 + $0xd0] sm:$0xff]
          %v178 = vld [vmem:[%s122 + $0xd8] sm:$0xff]
          %v179 = vld [vmem:[%s122 + $0xe0] sm:$0xff]
          %v180 = vld [vmem:[%s122 + $0xe8] sm:$0xff]
          %v181 = vld [vmem:[%s122 + $0xf0] sm:$0xff]
          %v182 = vld [vmem:[%s122 + $0xf8] sm:$0xff]
          %v183 = vld [vmem:[%s122 + $0x100] sm:$0xff]
          %v184 = vld [vmem:[%s122 + $0x108] sm:$0xff]
          %v185 = vld [vmem:[%s122 + $0x110] sm:$0xff]
          %v186 = vld [vmem:[%s122 + $0x118] sm:$0xff]
          %v187 = vld [vmem:[%s122 + $0x120] sm:$0xff]
          %v188 = vld [vmem:[%s122 + $0x128] sm:$0xff]
          %v189 = vld [vmem:[%s122 + $0x130] sm:$0xff]
          %v190 = vld [vmem:[%s122 + $0x138] sm:$0xff]
          %v191 = vld [vmem:[%s122 + $0x140] sm:$0xff]
          %v192 = vld [vmem:[%s122 + $0x148] sm:$0xff]
          %v193 = vld [vmem:[%s122 + $0x150] sm:$0xff]
          %v194 = vld [vmem:[%s122 + $0x158] sm:$0xff]
          %v195 = vld [vmem:[%s122 + $0x160] sm:$0xff]
          %v196 = vld [vmem:[%s122 + $0x168] sm:$0xff]
          %v197 = vld [vmem:[%s122 + $0x170] sm:$0xff]
          %v198 = vld [vmem:[%s122 + $0x178] sm:$0xff]
          %v199 = vld [vmem:[%s122 + $0x180] sm:$0xff]
          %v200 = vld [vmem:[%s122 + $0x188] sm:$0xff]
          %v201 = vld [vmem:[%s122 + $0x190] sm:$0xff]
          %v202 = vld [vmem:[%s122 + $0x198] sm:$0xff]
          %v203 = vld [vmem:[%s122 + $0x1a0] sm:$0xff]
          %v204 = vld [vmem:[%s122 + $0x1a8] sm:$0xff]
          %v205 = vld [vmem:[%s122 + $0x1b0] sm:$0xff]
          %v206 = vld [vmem:[%s122 + $0x1b8] sm:$0xff]
          %v207 = vld [vmem:[%s122 + $0x1c0] sm:$0xff]
          %v208 = vld [vmem:[%s122 + $0x1c8] sm:$0xff]
          %v209 = vld [vmem:[%s122 + $0x1d0] sm:$0xff]
          %v210 = vld [vmem:[%s122 + $0x1d8] sm:$0xff]
          %v211 = vld [vmem:[%s122 + $0x1e0] sm:$0xff]
          %v212 = vld [vmem:[%s122 + $0x1e8] sm:$0xff]
          %v213 = vld [vmem:[%s122 + $0x1f0] sm:$0xff]
          %v214 = vld [vmem:[%s122 + $0x1f8] sm:$0xff]
          %v215 = vadd.f32 %v151, 1e-20
          %v216 = vadd.f32 %v152, 1e-20
          %v217 = vadd.f32 %v153, 1e-20
          %v218 = vadd.f32 %v154, 1e-20
          %v219 = vadd.f32 %v155, 1e-20
          %v220 = vadd.f32 %v156, 1e-20
          %v221 = vadd.f32 %v157, 1e-20
          %v222 = vadd.f32 %v158, 1e-20
          %v223 = vadd.f32 %v159, 1e-20
          %v224 = vadd.f32 %v160, 1e-20
          %v225 = vadd.f32 %v161, 1e-20
          %v226 = vadd.f32 %v162, 1e-20
          %v227 = vadd.f32 %v163, 1e-20
          %v228 = vadd.f32 %v164, 1e-20
          %v229 = vadd.f32 %v165, 1e-20
          %v230 = vadd.f32 %v166, 1e-20
          %v231 = vadd.f32 %v167, 1e-20
          %v232 = vadd.f32 %v168, 1e-20
          %v233 = vadd.f32 %v169, 1e-20
          %v234 = vadd.f32 %v170, 1e-20
          %v235 = vadd.f32 %v171, 1e-20
          %v236 = vadd.f32 %v172, 1e-20
          %v237 = vadd.f32 %v173, 1e-20
          %v238 = vadd.f32 %v174, 1e-20
          %v239 = vadd.f32 %v175, 1e-20
          %v240 = vadd.f32 %v176, 1e-20
          %v241 = vadd.f32 %v177, 1e-20
          %v242 = vadd.f32 %v178, 1e-20
          %v243 = vadd.f32 %v179, 1e-20
          %v244 = vadd.f32 %v180, 1e-20
          %v245 = vadd.f32 %v181, 1e-20
          %v246 = vadd.f32 %v182, 1e-20
          %v247 = vadd.f32 %v183, 1e-20
          %v248 = vadd.f32 %v184, 1e-20
          %v249 = vadd.f32 %v185, 1e-20
          %v250 = vadd.f32 %v186, 1e-20
          %v251 = vadd.f32 %v187, 1e-20
          %v252 = vadd.f32 %v188, 1e-20
          %v253 = vadd.f32 %v189, 1e-20
          %v254 = vadd.f32 %v190, 1e-20
          %v255 = vadd.f32 %v191, 1e-20
          %v256 = vadd.f32 %v192, 1e-20
          %v257 = vadd.f32 %v193, 1e-20
          %v258 = vadd.f32 %v194, 1e-20
          %v259 = vadd.f32 %v195, 1e-20
          %v260 = vadd.f32 %v196, 1e-20
          %v261 = vadd.f32 %v197, 1e-20
          %v262 = vadd.f32 %v198, 1e-20
          %v263 = vadd.f32 %v199, 1e-20
          %v264 = vadd.f32 %v200, 1e-20
          %v265 = vadd.f32 %v201, 1e-20
          %v266 = vadd.f32 %v202, 1e-20
          %v267 = vadd.f32 %v203, 1e-20
          %v268 = vadd.f32 %v204, 1e-20
          %v269 = vadd.f32 %v205, 1e-20
          %v270 = vadd.f32 %v206, 1e-20
          %v271 = vadd.f32 %v207, 1e-20
          %v272 = vadd.f32 %v208, 1e-20
          %v273 = vadd.f32 %v209, 1e-20
          %v274 = vadd.f32 %v210, 1e-20
          %v275 = vadd.f32 %v211, 1e-20
          %v276 = vadd.f32 %v212, 1e-20
          %v277 = vadd.f32 %v213, 1e-20
          %v278 = vadd.f32 %v214, 1e-20
          %v279 = vlog2.pop %v215
          %v280 = vmul.f32 %v279, 0.6931472
          %v281 = vlog2.pop %v216
          %v282 = vmul.f32 %v281, 0.6931472
          %v283 = vlog2.pop %v217
          %v284 = vmul.f32 %v283, 0.6931472
          %v285 = vlog2.pop %v218
          %v286 = vmul.f32 %v285, 0.6931472
          %v287 = vlog2.pop %v219
          %v288 = vmul.f32 %v287, 0.6931472
          %v289 = vlog2.pop %v220
          %v290 = vmul.f32 %v289, 0.6931472
          %v291 = vlog2.pop %v221
          %v292 = vmul.f32 %v291, 0.6931472
          %v293 = vlog2.pop %v222
          %v294 = vmul.f32 %v293, 0.6931472
          %v295 = vlog2.pop %v223
          %v296 = vmul.f32 %v295, 0.6931472
          %v297 = vlog2.pop %v224
          %v298 = vmul.f32 %v297, 0.6931472
          %v299 = vlog2.pop %v225
          %v300 = vmul.f32 %v299, 0.6931472
          %v301 = vlog2.pop %v226
          %v302 = vmul.f32 %v301, 0.6931472
          %v303 = vlog2.pop %v227
          %v304 = vmul.f32 %v303, 0.6931472
          %v305 = vlog2.pop %v228
          %v306 = vmul.f32 %v305, 0.6931472
          %v307 = vlog2.pop %v229
          %v308 = vmul.f32 %v307, 0.6931472
          %v309 = vlog2.pop %v230
          %v310 = vmul.f32 %v309, 0.6931472
          %v311 = vlog2.pop %v231
          %v312 = vmul.f32 %v311, 0.6931472
          %v313 = vlog2.pop %v232
          %v314 = vmul.f32 %v313, 0.6931472
          %v315 = vlog2.pop %v233
          %v316 = vmul.f32 %v315, 0.6931472
          %v317 = vlog2.pop %v234
          %v318 = vmul.f32 %v317, 0.6931472
          %v319 = vlog2.pop %v235
          %v320 = vmul.f32 %v319, 0.6931472
          %v321 = vlog2.pop %v236
          %v322 = vmul.f32 %v321, 0.6931472
          %v323 = vlog2.pop %v237
          %v324 = vmul.f32 %v323, 0.6931472
          %v325 = vlog2.pop %v238
          %v326 = vmul.f32 %v325, 0.6931472
          %v327 = vlog2.pop %v239
          %v328 = vmul.f32 %v327, 0.6931472
          %v329 = vlog2.pop %v240
          %v330 = vmul.f32 %v329, 0.6931472
          %v331 = vlog2.pop %v241
          %v332 = vmul.f32 %v331, 0.6931472
          %v333 = vlog2.pop %v242
          %v334 = vmul.f32 %v333, 0.6931472
          %v335 = vlog2.pop %v243
          %v336 = vmul.f32 %v335, 0.6931472
          %v337 = vlog2.pop %v244
          %v338 = vmul.f32 %v337, 0.6931472
          %v339 = vlog2.pop %v245
          %v340 = vmul.f32 %v339, 0.6931472
          %v341 = vlog2.pop %v246
          %v342 = vmul.f32 %v341, 0.6931472
          %v343 = vlog2.pop %v247
          %v344 = vmul.f32 %v343, 0.6931472
          %v345 = vlog2.pop %v248
          %v346 = vmul.f32 %v345, 0.6931472
          %v347 = vlog2.pop %v249
          %v348 = vmul.f32 %v347, 0.6931472
          %v349 = vlog2.pop %v250
          %v350 = vmul.f32 %v349, 0.6931472
          %v351 = vlog2.pop %v251
          %v352 = vmul.f32 %v351, 0.6931472
          %v353 = vlog2.pop %v252
          %v354 = vmul.f32 %v353, 0.6931472
          %v355 = vlog2.pop %v253
          %v356 = vmul.f32 %v355, 0.6931472
          %v357 = vlog2.pop %v254
          %v358 = vmul.f32 %v357, 0.6931472
          %v359 = vlog2.pop %v255
          %v360 = vmul.f32 %v359, 0.6931472
          %v361 = vlog2.pop %v256
          %v362 = vmul.f32 %v361, 0.6931472
          %v363 = vlog2.pop %v257
          %v364 = vmul.f32 %v363, 0.6931472
          %v365 = vlog2.pop %v258
          %v366 = vmul.f32 %v365, 0.6931472
          %v367 = vlog2.pop %v259
          %v368 = vmul.f32 %v367, 0.6931472
          %v369 = vlog2.pop %v260
          %v370 = vmul.f32 %v369, 0.6931472
          %v371 = vlog2.pop %v261
          %v372 = vmul.f32 %v371, 0.6931472
          %v373 = vlog2.pop %v262
          %v374 = vmul.f32 %v373, 0.6931472
          %v375 = vlog2.pop %v263
          %v376 = vmul.f32 %v375, 0.6931472
          %v377 = vlog2.pop %v264
          %v378 = vmul.f32 %v377, 0.6931472
          %v379 = vlog2.pop %v265
          %v380 = vmul.f32 %v379, 0.6931472
          %v381 = vlog2.pop %v266
          %v382 = vmul.f32 %v381, 0.6931472
          %v383 = vlog2.pop %v267
          %v384 = vmul.f32 %v383, 0.6931472
          %v385 = vlog2.pop %v268
          %v386 = vmul.f32 %v385, 0.6931472
          %v387 = vlog2.pop %v269
          %v388 = vmul.f32 %v387, 0.6931472
          %v389 = vlog2.pop %v270
          %v390 = vmul.f32 %v389, 0.6931472
          %v391 = vlog2.pop %v271
          %v392 = vmul.f32 %v391, 0.6931472
          %v393 = vlog2.pop %v272
          %v394 = vmul.f32 %v393, 0.6931472
          %v395 = vlog2.pop %v273
          %v396 = vmul.f32 %v395, 0.6931472
          %v397 = vlog2.pop %v274
          %v398 = vmul.f32 %v397, 0.6931472
          %v399 = vlog2.pop %v275
          %v400 = vmul.f32 %v399, 0.6931472
          %v401 = vlog2.pop %v276
          %v402 = vmul.f32 %v401, 0.6931472
          %v403 = vlog2.pop %v277
          %v404 = vmul.f32 %v403, 0.6931472
          %v405 = vlog2.pop %v278
          %v406 = vmul.f32 %v405, 0.6931472
          %v407 = vmul.f32 %v151, %v280
          %v408 = vmul.f32 %v152, %v282
          %v409 = vmul.f32 %v153, %v284
          %v410 = vmul.f32 %v154, %v286
          %v411 = vmul.f32 %v155, %v288
          %v412 = vmul.f32 %v156, %v290
          %v413 = vmul.f32 %v157, %v292
          %v414 = vmul.f32 %v158, %v294
          %v415 = vmul.f32 %v159, %v296
          %v416 = vmul.f32 %v160, %v298
          %v417 = vmul.f32 %v161, %v300
          %v418 = vmul.f32 %v162, %v302
          %v419 = vmul.f32 %v163, %v304
          %v420 = vmul.f32 %v164, %v306
          %v421 = vmul.f32 %v165, %v308
          %v422 = vmul.f32 %v166, %v310
          %v423 = vmul.f32 %v167, %v312
          %v424 = vmul.f32 %v168, %v314
          %v425 = vmul.f32 %v169, %v316
          %v426 = vmul.f32 %v170, %v318
          %v427 = vmul.f32 %v171, %v320
          %v428 = vmul.f32 %v172, %v322
          %v429 = vmul.f32 %v173, %v324
          %v430 = vmul.f32 %v174, %v326
          %v431 = vmul.f32 %v175, %v328
          %v432 = vmul.f32 %v176, %v330
          %v433 = vmul.f32 %v177, %v332
          %v434 = vmul.f32 %v178, %v334
          %v435 = vmul.f32 %v179, %v336
          %v436 = vmul.f32 %v180, %v338
          %v437 = vmul.f32 %v181, %v340
          %v438 = vmul.f32 %v182, %v342
          %v439 = vmul.f32 %v183, %v344
          %v440 = vmul.f32 %v184, %v346
          %v441 = vmul.f32 %v185, %v348
          %v442 = vmul.f32 %v186, %v350
          %v443 = vmul.f32 %v187, %v352
          %v444 = vmul.f32 %v188, %v354
          %v445 = vmul.f32 %v189, %v356
          %v446 = vmul.f32 %v190, %v358
          %v447 = vmul.f32 %v191, %v360
          %v448 = vmul.f32 %v192, %v362
          %v449 = vmul.f32 %v193, %v364
          %v450 = vmul.f32 %v194, %v366
          %v451 = vmul.f32 %v195, %v368
          %v452 = vmul.f32 %v196, %v370
          %v453 = vmul.f32 %v197, %v372
          %v454 = vmul.f32 %v198, %v374
          %v455 = vmul.f32 %v199, %v376
          %v456 = vmul.f32 %v200, %v378
          %v457 = vmul.f32 %v201, %v380
          %v458 = vmul.f32 %v202, %v382
          %v459 = vmul.f32 %v203, %v384
          %v460 = vmul.f32 %v204, %v386
          %v461 = vmul.f32 %v205, %v388
          %v462 = vmul.f32 %v206, %v390
          %v463 = vmul.f32 %v207, %v392
          %v464 = vmul.f32 %v208, %v394
          %v465 = vmul.f32 %v209, %v396
          %v466 = vmul.f32 %v210, %v398
          %v467 = vmul.f32 %v211, %v400
          %v468 = vmul.f32 %v212, %v402
          %v469 = vmul.f32 %v213, %v404
          %v470 = vmul.f32 %v214, %v406
          %v471 = vsub.f32 1.0, %v151
          %v472 = vsub.f32 1.0, %v152
          %v473 = vsub.f32 1.0, %v153
          %v474 = vsub.f32 1.0, %v154
          %v475 = vsub.f32 1.0, %v155
          %v476 = vsub.f32 1.0, %v156
          %v477 = vsub.f32 1.0, %v157
          %v478 = vsub.f32 1.0, %v158
          %v479 = vsub.f32 1.0, %v159
          %v480 = vsub.f32 1.0, %v160
          %v481 = vsub.f32 1.0, %v161
          %v482 = vsub.f32 1.0, %v162
          %v483 = vsub.f32 1.0, %v163
          %v484 = vsub.f32 1.0, %v164
          %v485 = vsub.f32 1.0, %v165
          %v486 = vsub.f32 1.0, %v166
          %v487 = vsub.f32 1.0, %v167
          %v488 = vsub.f32 1.0, %v168
          %v489 = vsub.f32 1.0, %v169
          %v490 = vsub.f32 1.0, %v170
          %v491 = vsub.f32 1.0, %v171
          %v492 = vsub.f32 1.0, %v172
          %v493 = vsub.f32 1.0, %v173
          %v494 = vsub.f32 1.0, %v174
          %v495 = vsub.f32 1.0, %v175
          %v496 = vsub.f32 1.0, %v176
          %v497 = vsub.f32 1.0, %v177
          %v498 = vsub.f32 1.0, %v178
          %v499 = vsub.f32 1.0, %v179
          %v500 = vsub.f32 1.0, %v180
          %v501 = vsub.f32 1.0, %v181
          %v502 = vsub.f32 1.0, %v182
          %v503 = vsub.f32 1.0, %v183
          %v504 = vsub.f32 1.0, %v184
          %v505 = vsub.f32 1.0, %v185
          %v506 = vsub.f32 1.0, %v186
          %v507 = vsub.f32 1.0, %v187
          %v508 = vsub.f32 1.0, %v188
          %v509 = vsub.f32 1.0, %v189
          %v510 = vsub.f32 1.0, %v190
          %v511 = vsub.f32 1.0, %v191
          %v512 = vsub.f32 1.0, %v192
          %v513 = vsub.f32 1.0, %v193
          %v514 = vsub.f32 1.0, %v194
          %v515 = vsub.f32 1.0, %v195
          %v516 = vsub.f32 1.0, %v196
          %v517 = vsub.f32 1.0, %v197
          %v518 = vsub.f32 1.0, %v198
          %v519 = vsub.f32 1.0, %v199
          %v520 = vsub.f32 1.0, %v200
          %v521 = vsub.f32 1.0, %v201
          %v522 = vsub.f32 1.0, %v202
          %v523 = vsub.f32 1.0, %v203
          %v524 = vsub.f32 1.0, %v204
          %v525 = vsub.f32 1.0, %v205
          %v526 = vsub.f32 1.0, %v206
          %v527 = vsub.f32 1.0, %v207
          %v528 = vsub.f32 1.0, %v208
          %v529 = vsub.f32 1.0, %v209
          %v530 = vsub.f32 1.0, %v210
          %v531 = vsub.f32 1.0, %v211
          %v532 = vsub.f32 1.0, %v212
          %v533 = vsub.f32 1.0, %v213
          %v534 = vsub.f32 1.0, %v214
          %v535 = vadd.f32 %v471, 1e-20
          %v536 = vadd.f32 %v472, 1e-20
          %v537 = vadd.f32 %v473, 1e-20
          %v538 = vadd.f32 %v474, 1e-20
          %v539 = vadd.f32 %v475, 1e-20
          %v540 = vadd.f32 %v476, 1e-20
          %v541 = vadd.f32 %v477, 1e-20
          %v542 = vadd.f32 %v478, 1e-20
          %v543 = vadd.f32 %v479, 1e-20
          %v544 = vadd.f32 %v480, 1e-20
          %v545 = vadd.f32 %v481, 1e-20
          %v546 = vadd.f32 %v482, 1e-20
          %v547 = vadd.f32 %v483, 1e-20
          %v548 = vadd.f32 %v484, 1e-20
          %v549 = vadd.f32 %v485, 1e-20
          %v550 = vadd.f32 %v486, 1e-20
          %v551 = vadd.f32 %v487, 1e-20
          %v552 = vadd.f32 %v488, 1e-20
          %v553 = vadd.f32 %v489, 1e-20
          %v554 = vadd.f32 %v490, 1e-20
          %v555 = vadd.f32 %v491, 1e-20
          %v556 = vadd.f32 %v492, 1e-20
          %v557 = vadd.f32 %v493, 1e-20
          %v558 = vadd.f32 %v494, 1e-20
          %v559 = vadd.f32 %v495, 1e-20
          %v560 = vadd.f32 %v496, 1e-20
          %v561 = vadd.f32 %v497, 1e-20
          %v562 = vadd.f32 %v498, 1e-20
          %v563 = vadd.f32 %v499, 1e-20
          %v564 = vadd.f32 %v500, 1e-20
          %v565 = vadd.f32 %v501, 1e-20
          %v566 = vadd.f32 %v502, 1e-20
          %v567 = vadd.f32 %v503, 1e-20
          %v568 = vadd.f32 %v504, 1e-20
          %v569 = vadd.f32 %v505, 1e-20
          %v570 = vadd.f32 %v506, 1e-20
          %v571 = vadd.f32 %v507, 1e-20
          %v572 = vadd.f32 %v508, 1e-20
          %v573 = vadd.f32 %v509, 1e-20
          %v574 = vadd.f32 %v510, 1e-20
          %v575 = vadd.f32 %v511, 1e-20
          %v576 = vadd.f32 %v512, 1e-20
          %v577 = vadd.f32 %v513, 1e-20
          %v578 = vadd.f32 %v514, 1e-20
          %v579 = vadd.f32 %v515, 1e-20
          %v580 = vadd.f32 %v516, 1e-20
          %v581 = vadd.f32 %v517, 1e-20
          %v582 = vadd.f32 %v518, 1e-20
          %v583 = vadd.f32 %v519, 1e-20
          %v584 = vadd.f32 %v520, 1e-20
          %v585 = vadd.f32 %v521, 1e-20
          %v586 = vadd.f32 %v522, 1e-20
          %v587 = vadd.f32 %v523, 1e-20
          %v588 = vadd.f32 %v524, 1e-20
          %v589 = vadd.f32 %v525, 1e-20
          %v590 = vadd.f32 %v526, 1e-20
          %v591 = vadd.f32 %v527, 1e-20
          %v592 = vadd.f32 %v528, 1e-20
          %v593 = vadd.f32 %v529, 1e-20
          %v594 = vadd.f32 %v530, 1e-20
          %v595 = vadd.f32 %v531, 1e-20
          %v596 = vadd.f32 %v532, 1e-20
          %v597 = vadd.f32 %v533, 1e-20
          %v598 = vadd.f32 %v534, 1e-20
          %v599 = vlog2.pop %v535
          %v600 = vmul.f32 %v599, 0.6931472
          %v601 = vlog2.pop %v536
          %v602 = vmul.f32 %v601, 0.6931472
          %v603 = vlog2.pop %v537
          %v604 = vmul.f32 %v603, 0.6931472
          %v605 = vlog2.pop %v538
          %v606 = vmul.f32 %v605, 0.6931472
          %v607 = vlog2.pop %v539
          %v608 = vmul.f32 %v607, 0.6931472
          %v609 = vlog2.pop %v540
          %v610 = vmul.f32 %v609, 0.6931472
          %v611 = vlog2.pop %v541
          %v612 = vmul.f32 %v611, 0.6931472
          %v613 = vlog2.pop %v542
          %v614 = vmul.f32 %v613, 0.6931472
          %v615 = vlog2.pop %v543
          %v616 = vmul.f32 %v615, 0.6931472
          %v617 = vlog2.pop %v544
          %v618 = vmul.f32 %v617, 0.6931472
          %v619 = vlog2.pop %v545
          %v620 = vmul.f32 %v619, 0.6931472
          %v621 = vlog2.pop %v546
          %v622 = vmul.f32 %v621, 0.6931472
          %v623 = vlog2.pop %v547
          %v624 = vmul.f32 %v623, 0.6931472
          %v625 = vlog2.pop %v548
          %v626 = vmul.f32 %v625, 0.6931472
          %v627 = vlog2.pop %v549
          %v628 = vmul.f32 %v627, 0.6931472
          %v629 = vlog2.pop %v550
          %v630 = vmul.f32 %v629, 0.6931472
          %v631 = vlog2.pop %v551
          %v632 = vmul.f32 %v631, 0.6931472
          %v633 = vlog2.pop %v552
          %v634 = vmul.f32 %v633, 0.6931472
          %v635 = vlog2.pop %v553
          %v636 = vmul.f32 %v635, 0.6931472
          %v637 = vlog2.pop %v554
          %v638 = vmul.f32 %v637, 0.6931472
          %v639 = vlog2.pop %v555
          %v640 = vmul.f32 %v639, 0.6931472
          %v641 = vlog2.pop %v556
          %v642 = vmul.f32 %v641, 0.6931472
          %v643 = vlog2.pop %v557
          %v644 = vmul.f32 %v643, 0.6931472
          %v645 = vlog2.pop %v558
          %v646 = vmul.f32 %v645, 0.6931472
          %v647 = vlog2.pop %v559
          %v648 = vmul.f32 %v647, 0.6931472
          %v649 = vlog2.pop %v560
          %v650 = vmul.f32 %v649, 0.6931472
          %v651 = vlog2.pop %v561
          %v652 = vmul.f32 %v651, 0.6931472
          %v653 = vlog2.pop %v562
          %v654 = vmul.f32 %v653, 0.6931472
          %v655 = vlog2.pop %v563
          %v656 = vmul.f32 %v655, 0.6931472
          %v657 = vlog2.pop %v564
          %v658 = vmul.f32 %v657, 0.6931472
          %v659 = vlog2.pop %v565
          %v660 = vmul.f32 %v659, 0.6931472
          %v661 = vlog2.pop %v566
          %v662 = vmul.f32 %v661, 0.6931472
          %v663 = vlog2.pop %v567
          %v664 = vmul.f32 %v663, 0.6931472
          %v665 = vlog2.pop %v568
          %v666 = vmul.f32 %v665, 0.6931472
          %v667 = vlog2.pop %v569
          %v668 = vmul.f32 %v667, 0.6931472
          %v669 = vlog2.pop %v570
          %v670 = vmul.f32 %v669, 0.6931472
          %v671 = vlog2.pop %v571
          %v672 = vmul.f32 %v671, 0.6931472
          %v673 = vlog2.pop %v572
          %v674 = vmul.f32 %v673, 0.6931472
          %v675 = vlog2.pop %v573
          %v676 = vmul.f32 %v675, 0.6931472
          %v677 = vlog2.pop %v574
          %v678 = vmul.f32 %v677, 0.6931472
          %v679 = vlog2.pop %v575
          %v680 = vmul.f32 %v679, 0.6931472
          %v681 = vlog2.pop %v576
          %v682 = vmul.f32 %v681, 0.6931472
          %v683 = vlog2.pop %v577
          %v684 = vmul.f32 %v683, 0.6931472
          %v685 = vlog2.pop %v578
          %v686 = vmul.f32 %v685, 0.6931472
          %v687 = vlog2.pop %v579
          %v688 = vmul.f32 %v687, 0.6931472
          %v689 = vlog2.pop %v580
          %v690 = vmul.f32 %v689, 0.6931472
          %v691 = vlog2.pop %v581
          %v692 = vmul.f32 %v691, 0.6931472
          %v693 = vlog2.pop %v582
          %v694 = vmul.f32 %v693, 0.6931472
          %v695 = vlog2.pop %v583
          %v696 = vmul.f32 %v695, 0.6931472
          %v697 = vlog2.pop %v584
          %v698 = vmul.f32 %v697, 0.6931472
          %v699 = vlog2.pop %v585
          %v700 = vmul.f32 %v699, 0.6931472
          %v701 = vlog2.pop %v586
          %v702 = vmul.f32 %v701, 0.6931472
          %v703 = vlog2.pop %v587
          %v704 = vmul.f32 %v703, 0.6931472
          %v705 = vlog2.pop %v588
          %v706 = vmul.f32 %v705, 0.6931472
          %v707 = vlog2.pop %v589
          %v708 = vmul.f32 %v707, 0.6931472
          %v709 = vlog2.pop %v590
          %v710 = vmul.f32 %v709, 0.6931472
          %v711 = vlog2.pop %v591
          %v712 = vmul.f32 %v711, 0.6931472
          %v713 = vlog2.pop %v592
          %v714 = vmul.f32 %v713, 0.6931472
          %v715 = vlog2.pop %v593
          %v716 = vmul.f32 %v715, 0.6931472
          %v717 = vlog2.pop %v594
          %v718 = vmul.f32 %v717, 0.6931472
          %v719 = vlog2.pop %v595
          %v720 = vmul.f32 %v719, 0.6931472
          %v721 = vlog2.pop %v596
          %v722 = vmul.f32 %v721, 0.6931472
          %v723 = vlog2.pop %v597
          %v724 = vmul.f32 %v723, 0.6931472
          %v725 = vlog2.pop %v598
          %v726 = vmul.f32 %v725, 0.6931472
          %v727 = vmul.f32 %v471, %v600
          %v728 = vmul.f32 %v472, %v602
          %v729 = vmul.f32 %v473, %v604
          %v730 = vmul.f32 %v474, %v606
          %v731 = vmul.f32 %v475, %v608
          %v732 = vmul.f32 %v476, %v610
          %v733 = vmul.f32 %v477, %v612
          %v734 = vmul.f32 %v478, %v614
          %v735 = vmul.f32 %v479, %v616
          %v736 = vmul.f32 %v480, %v618
          %v737 = vmul.f32 %v481, %v620
          %v738 = vmul.f32 %v482, %v622
          %v739 = vmul.f32 %v483, %v624
          %v740 = vmul.f32 %v484, %v626
          %v741 = vmul.f32 %v485, %v628
          %v742 = vmul.f32 %v486, %v630
          %v743 = vmul.f32 %v487, %v632
          %v744 = vmul.f32 %v488, %v634
          %v745 = vmul.f32 %v489, %v636
          %v746 = vmul.f32 %v490, %v638
          %v747 = vmul.f32 %v491, %v640
          %v748 = vmul.f32 %v492, %v642
          %v749 = vmul.f32 %v493, %v644
          %v750 = vmul.f32 %v494, %v646
          %v751 = vmul.f32 %v495, %v648
          %v752 = vmul.f32 %v496, %v650
          %v753 = vmul.f32 %v497, %v652
          %v754 = vmul.f32 %v498, %v654
          %v755 = vmul.f32 %v499, %v656
          %v756 = vmul.f32 %v500, %v658
          %v757 = vmul.f32 %v501, %v660
          %v758 = vmul.f32 %v502, %v662
          %v759 = vmul.f32 %v503, %v664
          %v760 = vmul.f32 %v504, %v666
          %v761 = vmul.f32 %v505, %v668
          %v762 = vmul.f32 %v506, %v670
          %v763 = vmul.f32 %v507, %v672
          %v764 = vmul.f32 %v508, %v674
          %v765 = vmul.f32 %v509, %v676
          %v766 = vmul.f32 %v510, %v678
          %v767 = vmul.f32 %v511, %v680
          %v768 = vmul.f32 %v512, %v682
          %v769 = vmul.f32 %v513, %v684
          %v770 = vmul.f32 %v514, %v686
          %v771 = vmul.f32 %v515, %v688
          %v772 = vmul.f32 %v516, %v690
          %v773 = vmul.f32 %v517, %v692
          %v774 = vmul.f32 %v518, %v694
          %v775 = vmul.f32 %v519, %v696
          %v776 = vmul.f32 %v520, %v698
          %v777 = vmul.f32 %v521, %v700
          %v778 = vmul.f32 %v522, %v702
          %v779 = vmul.f32 %v523, %v704
          %v780 = vmul.f32 %v524, %v706
          %v781 = vmul.f32 %v525, %v708
          %v782 = vmul.f32 %v526, %v710
          %v783 = vmul.f32 %v527, %v712
          %v784 = vmul.f32 %v528, %v714
          %v785 = vmul.f32 %v529, %v716
          %v786 = vmul.f32 %v530, %v718
          %v787 = vmul.f32 %v531, %v720
          %v788 = vmul.f32 %v532, %v722
          %v789 = vmul.f32 %v533, %v724
          %v790 = vmul.f32 %v534, %v726
          %v791 = vadd.f32 %v407, %v727
          %v792 = vadd.f32 %v408, %v728
          %v793 = vadd.f32 %v409, %v729
          %v794 = vadd.f32 %v410, %v730
          %v795 = vadd.f32 %v411, %v731
          %v796 = vadd.f32 %v412, %v732
          %v797 = vadd.f32 %v413, %v733
          %v798 = vadd.f32 %v414, %v734
          %v799 = vadd.f32 %v415, %v735
          %v800 = vadd.f32 %v416, %v736
          %v801 = vadd.f32 %v417, %v737
          %v802 = vadd.f32 %v418, %v738
          %v803 = vadd.f32 %v419, %v739
          %v804 = vadd.f32 %v420, %v740
          %v805 = vadd.f32 %v421, %v741
          %v806 = vadd.f32 %v422, %v742
          %v807 = vadd.f32 %v423, %v743
          %v808 = vadd.f32 %v424, %v744
          %v809 = vadd.f32 %v425, %v745
          %v810 = vadd.f32 %v426, %v746
          %v811 = vadd.f32 %v427, %v747
          %v812 = vadd.f32 %v428, %v748
          %v813 = vadd.f32 %v429, %v749
          %v814 = vadd.f32 %v430, %v750
          %v815 = vadd.f32 %v431, %v751
          %v816 = vadd.f32 %v432, %v752
          %v817 = vadd.f32 %v433, %v753
          %v818 = vadd.f32 %v434, %v754
          %v819 = vadd.f32 %v435, %v755
          %v820 = vadd.f32 %v436, %v756
          %v821 = vadd.f32 %v437, %v757
          %v822 = vadd.f32 %v438, %v758
          %v823 = vadd.f32 %v439, %v759
          %v824 = vadd.f32 %v440, %v760
          %v825 = vadd.f32 %v441, %v761
          %v826 = vadd.f32 %v442, %v762
          %v827 = vadd.f32 %v443, %v763
          %v828 = vadd.f32 %v444, %v764
          %v829 = vadd.f32 %v445, %v765
          %v830 = vadd.f32 %v446, %v766
          %v831 = vadd.f32 %v447, %v767
          %v832 = vadd.f32 %v448, %v768
          %v833 = vadd.f32 %v449, %v769
          %v834 = vadd.f32 %v450, %v770
          %v835 = vadd.f32 %v451, %v771
          %v836 = vadd.f32 %v452, %v772
          %v837 = vadd.f32 %v453, %v773
          %v838 = vadd.f32 %v454, %v774
          %v839 = vadd.f32 %v455, %v775
          %v840 = vadd.f32 %v456, %v776
          %v841 = vadd.f32 %v457, %v777
          %v842 = vadd.f32 %v458, %v778
          %v843 = vadd.f32 %v459, %v779
          %v844 = vadd.f32 %v460, %v780
          %v845 = vadd.f32 %v461, %v781
          %v846 = vadd.f32 %v462, %v782
          %v847 = vadd.f32 %v463, %v783
          %v848 = vadd.f32 %v464, %v784
          %v849 = vadd.f32 %v465, %v785
          %v850 = vadd.f32 %v466, %v786
          %v851 = vadd.f32 %v467, %v787
          %v852 = vadd.f32 %v468, %v788
          %v853 = vadd.f32 %v469, %v789
          %v854 = vadd.f32 %v470, %v790
          %v855 = vsub.f32 0.0, %v791
          %v856 = vsub.f32 0.0, %v792
          %v857 = vsub.f32 0.0, %v793
          %v858 = vsub.f32 0.0, %v794
          %v859 = vsub.f32 0.0, %v795
          %v860 = vsub.f32 0.0, %v796
          %v861 = vsub.f32 0.0, %v797
          %v862 = vsub.f32 0.0, %v798
          %v863 = vsub.f32 0.0, %v799
          %v864 = vsub.f32 0.0, %v800
          %v865 = vsub.f32 0.0, %v801
          %v866 = vsub.f32 0.0, %v802
          %v867 = vsub.f32 0.0, %v803
          %v868 = vsub.f32 0.0, %v804
          %v869 = vsub.f32 0.0, %v805
          %v870 = vsub.f32 0.0, %v806
          %v871 = vsub.f32 0.0, %v807
          %v872 = vsub.f32 0.0, %v808
          %v873 = vsub.f32 0.0, %v809
          %v874 = vsub.f32 0.0, %v810
          %v875 = vsub.f32 0.0, %v811
          %v876 = vsub.f32 0.0, %v812
          %v877 = vsub.f32 0.0, %v813
          %v878 = vsub.f32 0.0, %v814
          %v879 = vsub.f32 0.0, %v815
          %v880 = vsub.f32 0.0, %v816
          %v881 = vsub.f32 0.0, %v817
          %v882 = vsub.f32 0.0, %v818
          %v883 = vsub.f32 0.0, %v819
          %v884 = vsub.f32 0.0, %v820
          %v885 = vsub.f32 0.0, %v821
          %v886 = vsub.f32 0.0, %v822
          %v887 = vsub.f32 0.0, %v823
          %v888 = vsub.f32 0.0, %v824
          %v889 = vsub.f32 0.0, %v825
          %v890 = vsub.f32 0.0, %v826
          %v891 = vsub.f32 0.0, %v827
          %v892 = vsub.f32 0.0, %v828
          %v893 = vsub.f32 0.0, %v829
          %v894 = vsub.f32 0.0, %v830
          %v895 = vsub.f32 0.0, %v831
          %v896 = vsub.f32 0.0, %v832
          %v897 = vsub.f32 0.0, %v833
          %v898 = vsub.f32 0.0, %v834
          %v899 = vsub.f32 0.0, %v835
          %v900 = vsub.f32 0.0, %v836
          %v901 = vsub.f32 0.0, %v837
          %v902 = vsub.f32 0.0, %v838
          %v903 = vsub.f32 0.0, %v839
          %v904 = vsub.f32 0.0, %v840
          %v905 = vsub.f32 0.0, %v841
          %v906 = vsub.f32 0.0, %v842
          %v907 = vsub.f32 0.0, %v843
          %v908 = vsub.f32 0.0, %v844
          %v909 = vsub.f32 0.0, %v845
          %v910 = vsub.f32 0.0, %v846
          %v911 = vsub.f32 0.0, %v847
          %v912 = vsub.f32 0.0, %v848
          %v913 = vsub.f32 0.0, %v849
          %v914 = vsub.f32 0.0, %v850
          %v915 = vsub.f32 0.0, %v851
          %v916 = vsub.f32 0.0, %v852
          %v917 = vsub.f32 0.0, %v853
          %v918 = vsub.f32 0.0, %v854
          %v919 = vadd.f32 %v855, %v856
          %v920 = vadd.f32 %v919, %v857
          %v921 = vadd.f32 %v920, %v858
          %v922 = vadd.f32 %v921, %v859
          %v923 = vadd.f32 %v922, %v860
          %v924 = vadd.f32 %v923, %v861
          %v925 = vadd.f32 %v924, %v862
          %v926 = vadd.f32 %v925, %v863
          %v927 = vadd.f32 %v926, %v864
          %v928 = vadd.f32 %v927, %v865
          %v929 = vadd.f32 %v928, %v866
          %v930 = vadd.f32 %v929, %v867
          %v931 = vadd.f32 %v930, %v868
          %v932 = vadd.f32 %v931, %v869
          %v933 = vadd.f32 %v932, %v870
          %v934 = vadd.f32 %v933, %v871
          %v935 = vadd.f32 %v934, %v872
          %v936 = vadd.f32 %v935, %v873
          %v937 = vadd.f32 %v936, %v874
          %v938 = vadd.f32 %v937, %v875
          %v939 = vadd.f32 %v938, %v876
          %v940 = vadd.f32 %v939, %v877
          %v941 = vadd.f32 %v940, %v878
          %v942 = vadd.f32 %v941, %v879
          %v943 = vadd.f32 %v942, %v880
          %v944 = vadd.f32 %v943, %v881
          %v945 = vadd.f32 %v944, %v882
          %v946 = vadd.f32 %v945, %v883
          %v947 = vadd.f32 %v946, %v884
          %v948 = vadd.f32 %v947, %v885
          %v949 = vadd.f32 %v948, %v886
          %v950 = vadd.f32 %v949, %v887
          %v951 = vadd.f32 %v950, %v888
          %v952 = vadd.f32 %v951, %v889
          %v953 = vadd.f32 %v952, %v890
          %v954 = vadd.f32 %v953, %v891
          %v955 = vadd.f32 %v954, %v892
          %v956 = vadd.f32 %v955, %v893
          %v957 = vadd.f32 %v956, %v894
          %v958 = vadd.f32 %v957, %v895
          %v959 = vadd.f32 %v958, %v896
          %v960 = vadd.f32 %v959, %v897
          %v961 = vadd.f32 %v960, %v898
          %v962 = vadd.f32 %v961, %v899
          %v963 = vadd.f32 %v962, %v900
          %v964 = vadd.f32 %v963, %v901
          %v965 = vadd.f32 %v964, %v902
          %v966 = vadd.f32 %v965, %v903
          %v967 = vadd.f32 %v966, %v904
          %v968 = vadd.f32 %v967, %v905
          %v969 = vadd.f32 %v968, %v906
          %v970 = vadd.f32 %v969, %v907
          %v971 = vadd.f32 %v970, %v908
          %v972 = vadd.f32 %v971, %v909
          %v973 = vadd.f32 %v972, %v910
          %v974 = vadd.f32 %v973, %v911
          %v975 = vadd.f32 %v974, %v912
          %v976 = vadd.f32 %v975, %v913
          %v977 = vadd.f32 %v976, %v914
          %v978 = vadd.f32 %v977, %v915
          %v979 = vadd.f32 %v978, %v916
          %v980 = vadd.f32 %v979, %v917
          %v981 = vadd.f32 %v980, %v918
          %v982 = vadd.f32 %v981, 0.0
          %983 = vst [vmem:[%s140] sm:$0xff] %v982
        $region32: #{tpu_custom_call.1} parent=23 // pred_fallthru
          _
        // Predicated region
        $region33: #{tpu_custom_call.1} parent=23 // pred_check
          %p984 = pneg %p146
        $region34: #{tpu_custom_call.1} parent=23 // pred_check_branch
          %986 = sbr.rel (%p984) target = $region36
        $region35: #{tpu_custom_call.1} parent=23 // pred_region
          %v987 = vld [vmem:[%s122] sm:$0xff]
          %v988 = vld [vmem:[%s122 + $0x8] sm:$0xff]
          %v989 = vld [vmem:[%s122 + $0x10] sm:$0xff]
          %v990 = vld [vmem:[%s122 + $0x18] sm:$0xff]
          %v991 = vld [vmem:[%s122 + $0x20] sm:$0xff]
          %v992 = vld [vmem:[%s122 + $0x28] sm:$0xff]
          %v993 = vld [vmem:[%s122 + $0x30] sm:$0xff]
          %v994 = vld [vmem:[%s122 + $0x38] sm:$0xff]
          %v995 = vld [vmem:[%s122 + $0x40] sm:$0xff]
          %v996 = vld [vmem:[%s122 + $0x48] sm:$0xff]
          %v997 = vld [vmem:[%s122 + $0x50] sm:$0xff]
          %v998 = vld [vmem:[%s122 + $0x58] sm:$0xff]
          %v999 = vld [vmem:[%s122 + $0x60] sm:$0xff]
          %v1000 = vld [vmem:[%s122 + $0x68] sm:$0xff]
          %v1001 = vld [vmem:[%s122 + $0x70] sm:$0xff]
          %v1002 = vld [vmem:[%s122 + $0x78] sm:$0xff]
          %v1003 = vld [vmem:[%s122 + $0x80] sm:$0xff]
          %v1004 = vld [vmem:[%s122 + $0x88] sm:$0xff]
          %v1005 = vld [vmem:[%s122 + $0x90] sm:$0xff]
          %v1006 = vld [vmem:[%s122 + $0x98] sm:$0xff]
          %v1007 = vld [vmem:[%s122 + $0xa0] sm:$0xff]
          %v1008 = vld [vmem:[%s122 + $0xa8] sm:$0xff]
          %v1009 = vld [vmem:[%s122 + $0xb0] sm:$0xff]
          %v1010 = vld [vmem:[%s122 + $0xb8] sm:$0xff]
          %v1011 = vld [vmem:[%s122 + $0xc0] sm:$0xff]
          %v1012 = vld [vmem:[%s122 + $0xc8] sm:$0xff]
          %v1013 = vld [vmem:[%s122 + $0xd0] sm:$0xff]
          %v1014 = vld [vmem:[%s122 + $0xd8] sm:$0xff]
          %v1015 = vld [vmem:[%s122 + $0xe0] sm:$0xff]
          %v1016 = vld [vmem:[%s122 + $0xe8] sm:$0xff]
          %v1017 = vld [vmem:[%s122 + $0xf0] sm:$0xff]
          %v1018 = vld [vmem:[%s122 + $0xf8] sm:$0xff]
          %v1019 = vld [vmem:[%s122 + $0x100] sm:$0xff]
          %v1020 = vld [vmem:[%s122 + $0x108] sm:$0xff]
          %v1021 = vld [vmem:[%s122 + $0x110] sm:$0xff]
          %v1022 = vld [vmem:[%s122 + $0x118] sm:$0xff]
          %v1023 = vld [vmem:[%s122 + $0x120] sm:$0xff]
          %v1024 = vld [vmem:[%s122 + $0x128] sm:$0xff]
          %v1025 = vld [vmem:[%s122 + $0x130] sm:$0xff]
          %v1026 = vld [vmem:[%s122 + $0x138] sm:$0xff]
          %v1027 = vld [vmem:[%s122 + $0x140] sm:$0xff]
          %v1028 = vld [vmem:[%s122 + $0x148] sm:$0xff]
          %v1029 = vld [vmem:[%s122 + $0x150] sm:$0xff]
          %v1030 = vld [vmem:[%s122 + $0x158] sm:$0xff]
          %v1031 = vld [vmem:[%s122 + $0x160] sm:$0xff]
          %v1032 = vld [vmem:[%s122 + $0x168] sm:$0xff]
          %v1033 = vld [vmem:[%s122 + $0x170] sm:$0xff]
          %v1034 = vld [vmem:[%s122 + $0x178] sm:$0xff]
          %v1035 = vld [vmem:[%s122 + $0x180] sm:$0xff]
          %v1036 = vld [vmem:[%s122 + $0x188] sm:$0xff]
          %v1037 = vld [vmem:[%s122 + $0x190] sm:$0xff]
          %v1038 = vld [vmem:[%s122 + $0x198] sm:$0xff]
          %v1039 = vld [vmem:[%s122 + $0x1a0] sm:$0xff]
          %v1040 = vld [vmem:[%s122 + $0x1a8] sm:$0xff]
          %v1041 = vld [vmem:[%s122 + $0x1b0] sm:$0xff]
          %v1042 = vld [vmem:[%s122 + $0x1b8] sm:$0xff]
          %v1043 = vld [vmem:[%s122 + $0x1c0] sm:$0xff]
          %v1044 = vld [vmem:[%s122 + $0x1c8] sm:$0xff]
          %v1045 = vld [vmem:[%s122 + $0x1d0] sm:$0xff]
          %v1046 = vld [vmem:[%s122 + $0x1d8] sm:$0xff]
          %v1047 = vld [vmem:[%s122 + $0x1e0] sm:$0xff]
          %v1048 = vld [vmem:[%s122 + $0x1e8] sm:$0xff]
          %v1049 = vld [vmem:[%s122 + $0x1f0] sm:$0xff]
          %v1050 = vld [vmem:[%s122 + $0x1f8] sm:$0xff]
          %v1051 = vadd.f32 %v987, 1e-20
          %v1052 = vadd.f32 %v988, 1e-20
          %v1053 = vadd.f32 %v989, 1e-20
          %v1054 = vadd.f32 %v990, 1e-20
          %v1055 = vadd.f32 %v991, 1e-20
          %v1056 = vadd.f32 %v992, 1e-20
          %v1057 = vadd.f32 %v993, 1e-20
          %v1058 = vadd.f32 %v994, 1e-20
          %v1059 = vadd.f32 %v995, 1e-20
          %v1060 = vadd.f32 %v996, 1e-20
          %v1061 = vadd.f32 %v997, 1e-20
          %v1062 = vadd.f32 %v998, 1e-20
          %v1063 = vadd.f32 %v999, 1e-20
          %v1064 = vadd.f32 %v1000, 1e-20
          %v1065 = vadd.f32 %v1001, 1e-20
          %v1066 = vadd.f32 %v1002, 1e-20
          %v1067 = vadd.f32 %v1003, 1e-20
          %v1068 = vadd.f32 %v1004, 1e-20
          %v1069 = vadd.f32 %v1005, 1e-20
          %v1070 = vadd.f32 %v1006, 1e-20
          %v1071 = vadd.f32 %v1007, 1e-20
          %v1072 = vadd.f32 %v1008, 1e-20
          %v1073 = vadd.f32 %v1009, 1e-20
          %v1074 = vadd.f32 %v1010, 1e-20
          %v1075 = vadd.f32 %v1011, 1e-20
          %v1076 = vadd.f32 %v1012, 1e-20
          %v1077 = vadd.f32 %v1013, 1e-20
          %v1078 = vadd.f32 %v1014, 1e-20
          %v1079 = vadd.f32 %v1015, 1e-20
          %v1080 = vadd.f32 %v1016, 1e-20
          %v1081 = vadd.f32 %v1017, 1e-20
          %v1082 = vadd.f32 %v1018, 1e-20
          %v1083 = vadd.f32 %v1019, 1e-20
          %v1084 = vadd.f32 %v1020, 1e-20
          %v1085 = vadd.f32 %v1021, 1e-20
          %v1086 = vadd.f32 %v1022, 1e-20
          %v1087 = vadd.f32 %v1023, 1e-20
          %v1088 = vadd.f32 %v1024, 1e-20
          %v1089 = vadd.f32 %v1025, 1e-20
          %v1090 = vadd.f32 %v1026, 1e-20
          %v1091 = vadd.f32 %v1027, 1e-20
          %v1092 = vadd.f32 %v1028, 1e-20
          %v1093 = vadd.f32 %v1029, 1e-20
          %v1094 = vadd.f32 %v1030, 1e-20
          %v1095 = vadd.f32 %v1031, 1e-20
          %v1096 = vadd.f32 %v1032, 1e-20
          %v1097 = vadd.f32 %v1033, 1e-20
          %v1098 = vadd.f32 %v1034, 1e-20
          %v1099 = vadd.f32 %v1035, 1e-20
          %v1100 = vadd.f32 %v1036, 1e-20
          %v1101 = vadd.f32 %v1037, 1e-20
          %v1102 = vadd.f32 %v1038, 1e-20
          %v1103 = vadd.f32 %v1039, 1e-20
          %v1104 = vadd.f32 %v1040, 1e-20
          %v1105 = vadd.f32 %v1041, 1e-20
          %v1106 = vadd.f32 %v1042, 1e-20
          %v1107 = vadd.f32 %v1043, 1e-20
          %v1108 = vadd.f32 %v1044, 1e-20
          %v1109 = vadd.f32 %v1045, 1e-20
          %v1110 = vadd.f32 %v1046, 1e-20
          %v1111 = vadd.f32 %v1047, 1e-20
          %v1112 = vadd.f32 %v1048, 1e-20
          %v1113 = vadd.f32 %v1049, 1e-20
          %v1114 = vadd.f32 %v1050, 1e-20
          %v1115 = vlog2.pop %v1051
          %v1116 = vmul.f32 %v1115, 0.6931472
          %v1117 = vlog2.pop %v1052
          %v1118 = vmul.f32 %v1117, 0.6931472
          %v1119 = vlog2.pop %v1053
          %v1120 = vmul.f32 %v1119, 0.6931472
          %v1121 = vlog2.pop %v1054
          %v1122 = vmul.f32 %v1121, 0.6931472
          %v1123 = vlog2.pop %v1055
          %v1124 = vmul.f32 %v1123, 0.6931472
          %v1125 = vlog2.pop %v1056
          %v1126 = vmul.f32 %v1125, 0.6931472
          %v1127 = vlog2.pop %v1057
          %v1128 = vmul.f32 %v1127, 0.6931472
          %v1129 = vlog2.pop %v1058
          %v1130 = vmul.f32 %v1129, 0.6931472
          %v1131 = vlog2.pop %v1059
          %v1132 = vmul.f32 %v1131, 0.6931472
          %v1133 = vlog2.pop %v1060
          %v1134 = vmul.f32 %v1133, 0.6931472
          %v1135 = vlog2.pop %v1061
          %v1136 = vmul.f32 %v1135, 0.6931472
          %v1137 = vlog2.pop %v1062
          %v1138 = vmul.f32 %v1137, 0.6931472
          %v1139 = vlog2.pop %v1063
          %v1140 = vmul.f32 %v1139, 0.6931472
          %v1141 = vlog2.pop %v1064
          %v1142 = vmul.f32 %v1141, 0.6931472
          %v1143 = vlog2.pop %v1065
          %v1144 = vmul.f32 %v1143, 0.6931472
          %v1145 = vlog2.pop %v1066
          %v1146 = vmul.f32 %v1145, 0.6931472
          %v1147 = vlog2.pop %v1067
          %v1148 = vmul.f32 %v1147, 0.6931472
          %v1149 = vlog2.pop %v1068
          %v1150 = vmul.f32 %v1149, 0.6931472
          %v1151 = vlog2.pop %v1069
          %v1152 = vmul.f32 %v1151, 0.6931472
          %v1153 = vlog2.pop %v1070
          %v1154 = vmul.f32 %v1153, 0.6931472
          %v1155 = vlog2.pop %v1071
          %v1156 = vmul.f32 %v1155, 0.6931472
          %v1157 = vlog2.pop %v1072
          %v1158 = vmul.f32 %v1157, 0.6931472
          %v1159 = vlog2.pop %v1073
          %v1160 = vmul.f32 %v1159, 0.6931472
          %v1161 = vlog2.pop %v1074
          %v1162 = vmul.f32 %v1161, 0.6931472
          %v1163 = vlog2.pop %v1075
          %v1164 = vmul.f32 %v1163, 0.6931472
          %v1165 = vlog2.pop %v1076
          %v1166 = vmul.f32 %v1165, 0.6931472
          %v1167 = vlog2.pop %v1077
          %v1168 = vmul.f32 %v1167, 0.6931472
          %v1169 = vlog2.pop %v1078
          %v1170 = vmul.f32 %v1169, 0.6931472
          %v1171 = vlog2.pop %v1079
          %v1172 = vmul.f32 %v1171, 0.6931472
          %v1173 = vlog2.pop %v1080
          %v1174 = vmul.f32 %v1173, 0.6931472
          %v1175 = vlog2.pop %v1081
          %v1176 = vmul.f32 %v1175, 0.6931472
          %v1177 = vlog2.pop %v1082
          %v1178 = vmul.f32 %v1177, 0.6931472
          %v1179 = vlog2.pop %v1083
          %v1180 = vmul.f32 %v1179, 0.6931472
          %v1181 = vlog2.pop %v1084
          %v1182 = vmul.f32 %v1181, 0.6931472
          %v1183 = vlog2.pop %v1085
          %v1184 = vmul.f32 %v1183, 0.6931472
          %v1185 = vlog2.pop %v1086
          %v1186 = vmul.f32 %v1185, 0.6931472
          %v1187 = vlog2.pop %v1087
          %v1188 = vmul.f32 %v1187, 0.6931472
          %v1189 = vlog2.pop %v1088
          %v1190 = vmul.f32 %v1189, 0.6931472
          %v1191 = vlog2.pop %v1089
          %v1192 = vmul.f32 %v1191, 0.6931472
          %v1193 = vlog2.pop %v1090
          %v1194 = vmul.f32 %v1193, 0.6931472
          %v1195 = vlog2.pop %v1091
          %v1196 = vmul.f32 %v1195, 0.6931472
          %v1197 = vlog2.pop %v1092
          %v1198 = vmul.f32 %v1197, 0.6931472
          %v1199 = vlog2.pop %v1093
          %v1200 = vmul.f32 %v1199, 0.6931472
          %v1201 = vlog2.pop %v1094
          %v1202 = vmul.f32 %v1201, 0.6931472
          %v1203 = vlog2.pop %v1095
          %v1204 = vmul.f32 %v1203, 0.6931472
          %v1205 = vlog2.pop %v1096
          %v1206 = vmul.f32 %v1205, 0.6931472
          %v1207 = vlog2.pop %v1097
          %v1208 = vmul.f32 %v1207, 0.6931472
          %v1209 = vlog2.pop %v1098
          %v1210 = vmul.f32 %v1209, 0.6931472
          %v1211 = vlog2.pop %v1099
          %v1212 = vmul.f32 %v1211, 0.6931472
          %v1213 = vlog2.pop %v1100
          %v1214 = vmul.f32 %v1213, 0.6931472
          %v1215 = vlog2.pop %v1101
          %v1216 = vmul.f32 %v1215, 0.6931472
          %v1217 = vlog2.pop %v1102
          %v1218 = vmul.f32 %v1217, 0.6931472
          %v1219 = vlog2.pop %v1103
          %v1220 = vmul.f32 %v1219, 0.6931472
          %v1221 = vlog2.pop %v1104
          %v1222 = vmul.f32 %v1221, 0.6931472
          %v1223 = vlog2.pop %v1105
          %v1224 = vmul.f32 %v1223, 0.6931472
          %v1225 = vlog2.pop %v1106
          %v1226 = vmul.f32 %v1225, 0.6931472
          %v1227 = vlog2.pop %v1107
          %v1228 = vmul.f32 %v1227, 0.6931472
          %v1229 = vlog2.pop %v1108
          %v1230 = vmul.f32 %v1229, 0.6931472
          %v1231 = vlog2.pop %v1109
          %v1232 = vmul.f32 %v1231, 0.6931472
          %v1233 = vlog2.pop %v1110
          %v1234 = vmul.f32 %v1233, 0.6931472
          %v1235 = vlog2.pop %v1111
          %v1236 = vmul.f32 %v1235, 0.6931472
          %v1237 = vlog2.pop %v1112
          %v1238 = vmul.f32 %v1237, 0.6931472
          %v1239 = vlog2.pop %v1113
          %v1240 = vmul.f32 %v1239, 0.6931472
          %v1241 = vlog2.pop %v1114
          %v1242 = vmul.f32 %v1241, 0.6931472
          %v1243 = vmul.f32 %v987, %v1116
          %v1244 = vmul.f32 %v988, %v1118
          %v1245 = vmul.f32 %v989, %v1120
          %v1246 = vmul.f32 %v990, %v1122
          %v1247 = vmul.f32 %v991, %v1124
          %v1248 = vmul.f32 %v992, %v1126
          %v1249 = vmul.f32 %v993, %v1128
          %v1250 = vmul.f32 %v994, %v1130
          %v1251 = vmul.f32 %v995, %v1132
          %v1252 = vmul.f32 %v996, %v1134
          %v1253 = vmul.f32 %v997, %v1136
          %v1254 = vmul.f32 %v998, %v1138
          %v1255 = vmul.f32 %v999, %v1140
          %v1256 = vmul.f32 %v1000, %v1142
          %v1257 = vmul.f32 %v1001, %v1144
          %v1258 = vmul.f32 %v1002, %v1146
          %v1259 = vmul.f32 %v1003, %v1148
          %v1260 = vmul.f32 %v1004, %v1150
          %v1261 = vmul.f32 %v1005, %v1152
          %v1262 = vmul.f32 %v1006, %v1154
          %v1263 = vmul.f32 %v1007, %v1156
          %v1264 = vmul.f32 %v1008, %v1158
          %v1265 = vmul.f32 %v1009, %v1160
          %v1266 = vmul.f32 %v1010, %v1162
          %v1267 = vmul.f32 %v1011, %v1164
          %v1268 = vmul.f32 %v1012, %v1166
          %v1269 = vmul.f32 %v1013, %v1168
          %v1270 = vmul.f32 %v1014, %v1170
          %v1271 = vmul.f32 %v1015, %v1172
          %v1272 = vmul.f32 %v1016, %v1174
          %v1273 = vmul.f32 %v1017, %v1176
          %v1274 = vmul.f32 %v1018, %v1178
          %v1275 = vmul.f32 %v1019, %v1180
          %v1276 = vmul.f32 %v1020, %v1182
          %v1277 = vmul.f32 %v1021, %v1184
          %v1278 = vmul.f32 %v1022, %v1186
          %v1279 = vmul.f32 %v1023, %v1188
          %v1280 = vmul.f32 %v1024, %v1190
          %v1281 = vmul.f32 %v1025, %v1192
          %v1282 = vmul.f32 %v1026, %v1194
          %v1283 = vmul.f32 %v1027, %v1196
          %v1284 = vmul.f32 %v1028, %v1198
          %v1285 = vmul.f32 %v1029, %v1200
          %v1286 = vmul.f32 %v1030, %v1202
          %v1287 = vmul.f32 %v1031, %v1204
          %v1288 = vmul.f32 %v1032, %v1206
          %v1289 = vmul.f32 %v1033, %v1208
          %v1290 = vmul.f32 %v1034, %v1210
          %v1291 = vmul.f32 %v1035, %v1212
          %v1292 = vmul.f32 %v1036, %v1214
          %v1293 = vmul.f32 %v1037, %v1216
          %v1294 = vmul.f32 %v1038, %v1218
          %v1295 = vmul.f32 %v1039, %v1220
          %v1296 = vmul.f32 %v1040, %v1222
          %v1297 = vmul.f32 %v1041, %v1224
          %v1298 = vmul.f32 %v1042, %v1226
          %v1299 = vmul.f32 %v1043, %v1228
          %v1300 = vmul.f32 %v1044, %v1230
          %v1301 = vmul.f32 %v1045, %v1232
          %v1302 = vmul.f32 %v1046, %v1234
          %v1303 = vmul.f32 %v1047, %v1236
          %v1304 = vmul.f32 %v1048, %v1238
          %v1305 = vmul.f32 %v1049, %v1240
          %v1306 = vmul.f32 %v1050, %v1242
          %v1307 = vsub.f32 1.0, %v987
          %v1308 = vsub.f32 1.0, %v988
          %v1309 = vsub.f32 1.0, %v989
          %v1310 = vsub.f32 1.0, %v990
          %v1311 = vsub.f32 1.0, %v991
          %v1312 = vsub.f32 1.0, %v992
          %v1313 = vsub.f32 1.0, %v993
          %v1314 = vsub.f32 1.0, %v994
          %v1315 = vsub.f32 1.0, %v995
          %v1316 = vsub.f32 1.0, %v996
          %v1317 = vsub.f32 1.0, %v997
          %v1318 = vsub.f32 1.0, %v998
          %v1319 = vsub.f32 1.0, %v999
          %v1320 = vsub.f32 1.0, %v1000
          %v1321 = vsub.f32 1.0, %v1001
          %v1322 = vsub.f32 1.0, %v1002
          %v1323 = vsub.f32 1.0, %v1003
          %v1324 = vsub.f32 1.0, %v1004
          %v1325 = vsub.f32 1.0, %v1005
          %v1326 = vsub.f32 1.0, %v1006
          %v1327 = vsub.f32 1.0, %v1007
          %v1328 = vsub.f32 1.0, %v1008
          %v1329 = vsub.f32 1.0, %v1009
          %v1330 = vsub.f32 1.0, %v1010
          %v1331 = vsub.f32 1.0, %v1011
          %v1332 = vsub.f32 1.0, %v1012
          %v1333 = vsub.f32 1.0, %v1013
          %v1334 = vsub.f32 1.0, %v1014
          %v1335 = vsub.f32 1.0, %v1015
          %v1336 = vsub.f32 1.0, %v1016
          %v1337 = vsub.f32 1.0, %v1017
          %v1338 = vsub.f32 1.0, %v1018
          %v1339 = vsub.f32 1.0, %v1019
          %v1340 = vsub.f32 1.0, %v1020
          %v1341 = vsub.f32 1.0, %v1021
          %v1342 = vsub.f32 1.0, %v1022
          %v1343 = vsub.f32 1.0, %v1023
          %v1344 = vsub.f32 1.0, %v1024
          %v1345 = vsub.f32 1.0, %v1025
          %v1346 = vsub.f32 1.0, %v1026
          %v1347 = vsub.f32 1.0, %v1027
          %v1348 = vsub.f32 1.0, %v1028
          %v1349 = vsub.f32 1.0, %v1029
          %v1350 = vsub.f32 1.0, %v1030
          %v1351 = vsub.f32 1.0, %v1031
          %v1352 = vsub.f32 1.0, %v1032
          %v1353 = vsub.f32 1.0, %v1033
          %v1354 = vsub.f32 1.0, %v1034
          %v1355 = vsub.f32 1.0, %v1035
          %v1356 = vsub.f32 1.0, %v1036
          %v1357 = vsub.f32 1.0, %v1037
          %v1358 = vsub.f32 1.0, %v1038
          %v1359 = vsub.f32 1.0, %v1039
          %v1360 = vsub.f32 1.0, %v1040
          %v1361 = vsub.f32 1.0, %v1041
          %v1362 = vsub.f32 1.0, %v1042
          %v1363 = vsub.f32 1.0, %v1043
          %v1364 = vsub.f32 1.0, %v1044
          %v1365 = vsub.f32 1.0, %v1045
          %v1366 = vsub.f32 1.0, %v1046
          %v1367 = vsub.f32 1.0, %v1047
          %v1368 = vsub.f32 1.0, %v1048
          %v1369 = vsub.f32 1.0, %v1049
          %v1370 = vsub.f32 1.0, %v1050
          %v1371 = vadd.f32 %v1307, 1e-20
          %v1372 = vadd.f32 %v1308, 1e-20
          %v1373 = vadd.f32 %v1309, 1e-20
          %v1374 = vadd.f32 %v1310, 1e-20
          %v1375 = vadd.f32 %v1311, 1e-20
          %v1376 = vadd.f32 %v1312, 1e-20
          %v1377 = vadd.f32 %v1313, 1e-20
          %v1378 = vadd.f32 %v1314, 1e-20
          %v1379 = vadd.f32 %v1315, 1e-20
          %v1380 = vadd.f32 %v1316, 1e-20
          %v1381 = vadd.f32 %v1317, 1e-20
          %v1382 = vadd.f32 %v1318, 1e-20
          %v1383 = vadd.f32 %v1319, 1e-20
          %v1384 = vadd.f32 %v1320, 1e-20
          %v1385 = vadd.f32 %v1321, 1e-20
          %v1386 = vadd.f32 %v1322, 1e-20
          %v1387 = vadd.f32 %v1323, 1e-20
          %v1388 = vadd.f32 %v1324, 1e-20
          %v1389 = vadd.f32 %v1325, 1e-20
          %v1390 = vadd.f32 %v1326, 1e-20
          %v1391 = vadd.f32 %v1327, 1e-20
          %v1392 = vadd.f32 %v1328, 1e-20
          %v1393 = vadd.f32 %v1329, 1e-20
          %v1394 = vadd.f32 %v1330, 1e-20
          %v1395 = vadd.f32 %v1331, 1e-20
          %v1396 = vadd.f32 %v1332, 1e-20
          %v1397 = vadd.f32 %v1333, 1e-20
          %v1398 = vadd.f32 %v1334, 1e-20
          %v1399 = vadd.f32 %v1335, 1e-20
          %v1400 = vadd.f32 %v1336, 1e-20
          %v1401 = vadd.f32 %v1337, 1e-20
          %v1402 = vadd.f32 %v1338, 1e-20
          %v1403 = vadd.f32 %v1339, 1e-20
          %v1404 = vadd.f32 %v1340, 1e-20
          %v1405 = vadd.f32 %v1341, 1e-20
          %v1406 = vadd.f32 %v1342, 1e-20
          %v1407 = vadd.f32 %v1343, 1e-20
          %v1408 = vadd.f32 %v1344, 1e-20
          %v1409 = vadd.f32 %v1345, 1e-20
          %v1410 = vadd.f32 %v1346, 1e-20
          %v1411 = vadd.f32 %v1347, 1e-20
          %v1412 = vadd.f32 %v1348, 1e-20
          %v1413 = vadd.f32 %v1349, 1e-20
          %v1414 = vadd.f32 %v1350, 1e-20
          %v1415 = vadd.f32 %v1351, 1e-20
          %v1416 = vadd.f32 %v1352, 1e-20
          %v1417 = vadd.f32 %v1353, 1e-20
          %v1418 = vadd.f32 %v1354, 1e-20
          %v1419 = vadd.f32 %v1355, 1e-20
          %v1420 = vadd.f32 %v1356, 1e-20
          %v1421 = vadd.f32 %v1357, 1e-20
          %v1422 = vadd.f32 %v1358, 1e-20
          %v1423 = vadd.f32 %v1359, 1e-20
          %v1424 = vadd.f32 %v1360, 1e-20
          %v1425 = vadd.f32 %v1361, 1e-20
          %v1426 = vadd.f32 %v1362, 1e-20
          %v1427 = vadd.f32 %v1363, 1e-20
          %v1428 = vadd.f32 %v1364, 1e-20
          %v1429 = vadd.f32 %v1365, 1e-20
          %v1430 = vadd.f32 %v1366, 1e-20
          %v1431 = vadd.f32 %v1367, 1e-20
          %v1432 = vadd.f32 %v1368, 1e-20
          %v1433 = vadd.f32 %v1369, 1e-20
          %v1434 = vadd.f32 %v1370, 1e-20
          %v1435 = vlog2.pop %v1371
          %v1436 = vmul.f32 %v1435, 0.6931472
          %v1437 = vlog2.pop %v1372
          %v1438 = vmul.f32 %v1437, 0.6931472
          %v1439 = vlog2.pop %v1373
          %v1440 = vmul.f32 %v1439, 0.6931472
          %v1441 = vlog2.pop %v1374
          %v1442 = vmul.f32 %v1441, 0.6931472
          %v1443 = vlog2.pop %v1375
          %v1444 = vmul.f32 %v1443, 0.6931472
          %v1445 = vlog2.pop %v1376
          %v1446 = vmul.f32 %v1445, 0.6931472
          %v1447 = vlog2.pop %v1377
          %v1448 = vmul.f32 %v1447, 0.6931472
          %v1449 = vlog2.pop %v1378
          %v1450 = vmul.f32 %v1449, 0.6931472
          %v1451 = vlog2.pop %v1379
          %v1452 = vmul.f32 %v1451, 0.6931472
          %v1453 = vlog2.pop %v1380
          %v1454 = vmul.f32 %v1453, 0.6931472
          %v1455 = vlog2.pop %v1381
          %v1456 = vmul.f32 %v1455, 0.6931472
          %v1457 = vlog2.pop %v1382
          %v1458 = vmul.f32 %v1457, 0.6931472
          %v1459 = vlog2.pop %v1383
          %v1460 = vmul.f32 %v1459, 0.6931472
          %v1461 = vlog2.pop %v1384
          %v1462 = vmul.f32 %v1461, 0.6931472
          %v1463 = vlog2.pop %v1385
          %v1464 = vmul.f32 %v1463, 0.6931472
          %v1465 = vlog2.pop %v1386
          %v1466 = vmul.f32 %v1465, 0.6931472
          %v1467 = vlog2.pop %v1387
          %v1468 = vmul.f32 %v1467, 0.6931472
          %v1469 = vlog2.pop %v1388
          %v1470 = vmul.f32 %v1469, 0.6931472
          %v1471 = vlog2.pop %v1389
          %v1472 = vmul.f32 %v1471, 0.6931472
          %v1473 = vlog2.pop %v1390
          %v1474 = vmul.f32 %v1473, 0.6931472
          %v1475 = vlog2.pop %v1391
          %v1476 = vmul.f32 %v1475, 0.6931472
          %v1477 = vlog2.pop %v1392
          %v1478 = vmul.f32 %v1477, 0.6931472
          %v1479 = vlog2.pop %v1393
          %v1480 = vmul.f32 %v1479, 0.6931472
          %v1481 = vlog2.pop %v1394
          %v1482 = vmul.f32 %v1481, 0.6931472
          %v1483 = vlog2.pop %v1395
          %v1484 = vmul.f32 %v1483, 0.6931472
          %v1485 = vlog2.pop %v1396
          %v1486 = vmul.f32 %v1485, 0.6931472
          %v1487 = vlog2.pop %v1397
          %v1488 = vmul.f32 %v1487, 0.6931472
          %v1489 = vlog2.pop %v1398
          %v1490 = vmul.f32 %v1489, 0.6931472
          %v1491 = vlog2.pop %v1399
          %v1492 = vmul.f32 %v1491, 0.6931472
          %v1493 = vlog2.pop %v1400
          %v1494 = vmul.f32 %v1493, 0.6931472
          %v1495 = vlog2.pop %v1401
          %v1496 = vmul.f32 %v1495, 0.6931472
          %v1497 = vlog2.pop %v1402
          %v1498 = vmul.f32 %v1497, 0.6931472
          %v1499 = vlog2.pop %v1403
          %v1500 = vmul.f32 %v1499, 0.6931472
          %v1501 = vlog2.pop %v1404
          %v1502 = vmul.f32 %v1501, 0.6931472
          %v1503 = vlog2.pop %v1405
          %v1504 = vmul.f32 %v1503, 0.6931472
          %v1505 = vlog2.pop %v1406
          %v1506 = vmul.f32 %v1505, 0.6931472
          %v1507 = vlog2.pop %v1407
          %v1508 = vmul.f32 %v1507, 0.6931472
          %v1509 = vlog2.pop %v1408
          %v1510 = vmul.f32 %v1509, 0.6931472
          %v1511 = vlog2.pop %v1409
          %v1512 = vmul.f32 %v1511, 0.6931472
          %v1513 = vlog2.pop %v1410
          %v1514 = vmul.f32 %v1513, 0.6931472
          %v1515 = vlog2.pop %v1411
          %v1516 = vmul.f32 %v1515, 0.6931472
          %v1517 = vlog2.pop %v1412
          %v1518 = vmul.f32 %v1517, 0.6931472
          %v1519 = vlog2.pop %v1413
          %v1520 = vmul.f32 %v1519, 0.6931472
          %v1521 = vlog2.pop %v1414
          %v1522 = vmul.f32 %v1521, 0.6931472
          %v1523 = vlog2.pop %v1415
          %v1524 = vmul.f32 %v1523, 0.6931472
          %v1525 = vlog2.pop %v1416
          %v1526 = vmul.f32 %v1525, 0.6931472
          %v1527 = vlog2.pop %v1417
          %v1528 = vmul.f32 %v1527, 0.6931472
          %v1529 = vlog2.pop %v1418
          %v1530 = vmul.f32 %v1529, 0.6931472
          %v1531 = vlog2.pop %v1419
          %v1532 = vmul.f32 %v1531, 0.6931472
          %v1533 = vlog2.pop %v1420
          %v1534 = vmul.f32 %v1533, 0.6931472
          %v1535 = vlog2.pop %v1421
          %v1536 = vmul.f32 %v1535, 0.6931472
          %v1537 = vlog2.pop %v1422
          %v1538 = vmul.f32 %v1537, 0.6931472
          %v1539 = vlog2.pop %v1423
          %v1540 = vmul.f32 %v1539, 0.6931472
          %v1541 = vlog2.pop %v1424
          %v1542 = vmul.f32 %v1541, 0.6931472
          %v1543 = vlog2.pop %v1425
          %v1544 = vmul.f32 %v1543, 0.6931472
          %v1545 = vlog2.pop %v1426
          %v1546 = vmul.f32 %v1545, 0.6931472
          %v1547 = vlog2.pop %v1427
          %v1548 = vmul.f32 %v1547, 0.6931472
          %v1549 = vlog2.pop %v1428
          %v1550 = vmul.f32 %v1549, 0.6931472
          %v1551 = vlog2.pop %v1429
          %v1552 = vmul.f32 %v1551, 0.6931472
          %v1553 = vlog2.pop %v1430
          %v1554 = vmul.f32 %v1553, 0.6931472
          %v1555 = vlog2.pop %v1431
          %v1556 = vmul.f32 %v1555, 0.6931472
          %v1557 = vlog2.pop %v1432
          %v1558 = vmul.f32 %v1557, 0.6931472
          %v1559 = vlog2.pop %v1433
          %v1560 = vmul.f32 %v1559, 0.6931472
          %v1561 = vlog2.pop %v1434
          %v1562 = vmul.f32 %v1561, 0.6931472
          %v1563 = vmul.f32 %v1307, %v1436
          %v1564 = vmul.f32 %v1308, %v1438
          %v1565 = vmul.f32 %v1309, %v1440
          %v1566 = vmul.f32 %v1310, %v1442
          %v1567 = vmul.f32 %v1311, %v1444
          %v1568 = vmul.f32 %v1312, %v1446
          %v1569 = vmul.f32 %v1313, %v1448
          %v1570 = vmul.f32 %v1314, %v1450
          %v1571 = vmul.f32 %v1315, %v1452
          %v1572 = vmul.f32 %v1316, %v1454
          %v1573 = vmul.f32 %v1317, %v1456
          %v1574 = vmul.f32 %v1318, %v1458
          %v1575 = vmul.f32 %v1319, %v1460
          %v1576 = vmul.f32 %v1320, %v1462
          %v1577 = vmul.f32 %v1321, %v1464
          %v1578 = vmul.f32 %v1322, %v1466
          %v1579 = vmul.f32 %v1323, %v1468
          %v1580 = vmul.f32 %v1324, %v1470
          %v1581 = vmul.f32 %v1325, %v1472
          %v1582 = vmul.f32 %v1326, %v1474
          %v1583 = vmul.f32 %v1327, %v1476
          %v1584 = vmul.f32 %v1328, %v1478
          %v1585 = vmul.f32 %v1329, %v1480
          %v1586 = vmul.f32 %v1330, %v1482
          %v1587 = vmul.f32 %v1331, %v1484
          %v1588 = vmul.f32 %v1332, %v1486
          %v1589 = vmul.f32 %v1333, %v1488
          %v1590 = vmul.f32 %v1334, %v1490
          %v1591 = vmul.f32 %v1335, %v1492
          %v1592 = vmul.f32 %v1336, %v1494
          %v1593 = vmul.f32 %v1337, %v1496
          %v1594 = vmul.f32 %v1338, %v1498
          %v1595 = vmul.f32 %v1339, %v1500
          %v1596 = vmul.f32 %v1340, %v1502
          %v1597 = vmul.f32 %v1341, %v1504
          %v1598 = vmul.f32 %v1342, %v1506
          %v1599 = vmul.f32 %v1343, %v1508
          %v1600 = vmul.f32 %v1344, %v1510
          %v1601 = vmul.f32 %v1345, %v1512
          %v1602 = vmul.f32 %v1346, %v1514
          %v1603 = vmul.f32 %v1347, %v1516
          %v1604 = vmul.f32 %v1348, %v1518
          %v1605 = vmul.f32 %v1349, %v1520
          %v1606 = vmul.f32 %v1350, %v1522
          %v1607 = vmul.f32 %v1351, %v1524
          %v1608 = vmul.f32 %v1352, %v1526
          %v1609 = vmul.f32 %v1353, %v1528
          %v1610 = vmul.f32 %v1354, %v1530
          %v1611 = vmul.f32 %v1355, %v1532
          %v1612 = vmul.f32 %v1356, %v1534
          %v1613 = vmul.f32 %v1357, %v1536
          %v1614 = vmul.f32 %v1358, %v1538
          %v1615 = vmul.f32 %v1359, %v1540
          %v1616 = vmul.f32 %v1360, %v1542
          %v1617 = vmul.f32 %v1361, %v1544
          %v1618 = vmul.f32 %v1362, %v1546
          %v1619 = vmul.f32 %v1363, %v1548
          %v1620 = vmul.f32 %v1364, %v1550
          %v1621 = vmul.f32 %v1365, %v1552
          %v1622 = vmul.f32 %v1366, %v1554
          %v1623 = vmul.f32 %v1367, %v1556
          %v1624 = vmul.f32 %v1368, %v1558
          %v1625 = vmul.f32 %v1369, %v1560
          %v1626 = vmul.f32 %v1370, %v1562
          %v1627 = vadd.f32 %v1243, %v1563
          %v1628 = vadd.f32 %v1244, %v1564
          %v1629 = vadd.f32 %v1245, %v1565
          %v1630 = vadd.f32 %v1246, %v1566
          %v1631 = vadd.f32 %v1247, %v1567
          %v1632 = vadd.f32 %v1248, %v1568
          %v1633 = vadd.f32 %v1249, %v1569
          %v1634 = vadd.f32 %v1250, %v1570
          %v1635 = vadd.f32 %v1251, %v1571
          %v1636 = vadd.f32 %v1252, %v1572
          %v1637 = vadd.f32 %v1253, %v1573
          %v1638 = vadd.f32 %v1254, %v1574
          %v1639 = vadd.f32 %v1255, %v1575
          %v1640 = vadd.f32 %v1256, %v1576
          %v1641 = vadd.f32 %v1257, %v1577
          %v1642 = vadd.f32 %v1258, %v1578
          %v1643 = vadd.f32 %v1259, %v1579
          %v1644 = vadd.f32 %v1260, %v1580
          %v1645 = vadd.f32 %v1261, %v1581
          %v1646 = vadd.f32 %v1262, %v1582
          %v1647 = vadd.f32 %v1263, %v1583
          %v1648 = vadd.f32 %v1264, %v1584
          %v1649 = vadd.f32 %v1265, %v1585
          %v1650 = vadd.f32 %v1266, %v1586
          %v1651 = vadd.f32 %v1267, %v1587
          %v1652 = vadd.f32 %v1268, %v1588
          %v1653 = vadd.f32 %v1269, %v1589
          %v1654 = vadd.f32 %v1270, %v1590
          %v1655 = vadd.f32 %v1271, %v1591
          %v1656 = vadd.f32 %v1272, %v1592
          %v1657 = vadd.f32 %v1273, %v1593
          %v1658 = vadd.f32 %v1274, %v1594
          %v1659 = vadd.f32 %v1275, %v1595
          %v1660 = vadd.f32 %v1276, %v1596
          %v1661 = vadd.f32 %v1277, %v1597
          %v1662 = vadd.f32 %v1278, %v1598
          %v1663 = vadd.f32 %v1279, %v1599
          %v1664 = vadd.f32 %v1280, %v1600
          %v1665 = vadd.f32 %v1281, %v1601
          %v1666 = vadd.f32 %v1282, %v1602
          %v1667 = vadd.f32 %v1283, %v1603
          %v1668 = vadd.f32 %v1284, %v1604
          %v1669 = vadd.f32 %v1285, %v1605
          %v1670 = vadd.f32 %v1286, %v1606
          %v1671 = vadd.f32 %v1287, %v1607
          %v1672 = vadd.f32 %v1288, %v1608
          %v1673 = vadd.f32 %v1289, %v1609
          %v1674 = vadd.f32 %v1290, %v1610
          %v1675 = vadd.f32 %v1291, %v1611
          %v1676 = vadd.f32 %v1292, %v1612
          %v1677 = vadd.f32 %v1293, %v1613
          %v1678 = vadd.f32 %v1294, %v1614
          %v1679 = vadd.f32 %v1295, %v1615
          %v1680 = vadd.f32 %v1296, %v1616
          %v1681 = vadd.f32 %v1297, %v1617
          %v1682 = vadd.f32 %v1298, %v1618
          %v1683 = vadd.f32 %v1299, %v1619
          %v1684 = vadd.f32 %v1300, %v1620
          %v1685 = vadd.f32 %v1301, %v1621
          %v1686 = vadd.f32 %v1302, %v1622
          %v1687 = vadd.f32 %v1303, %v1623
          %v1688 = vadd.f32 %v1304, %v1624
          %v1689 = vadd.f32 %v1305, %v1625
          %v1690 = vadd.f32 %v1306, %v1626
          %v1691 = vsub.f32 0.0, %v1627
          %v1692 = vsub.f32 0.0, %v1628
          %v1693 = vsub.f32 0.0, %v1629
          %v1694 = vsub.f32 0.0, %v1630
          %v1695 = vsub.f32 0.0, %v1631
          %v1696 = vsub.f32 0.0, %v1632
          %v1697 = vsub.f32 0.0, %v1633
          %v1698 = vsub.f32 0.0, %v1634
          %v1699 = vsub.f32 0.0, %v1635
          %v1700 = vsub.f32 0.0, %v1636
          %v1701 = vsub.f32 0.0, %v1637
          %v1702 = vsub.f32 0.0, %v1638
          %v1703 = vsub.f32 0.0, %v1639
          %v1704 = vsub.f32 0.0, %v1640
          %v1705 = vsub.f32 0.0, %v1641
          %v1706 = vsub.f32 0.0, %v1642
          %v1707 = vsub.f32 0.0, %v1643
          %v1708 = vsub.f32 0.0, %v1644
          %v1709 = vsub.f32 0.0, %v1645
          %v1710 = vsub.f32 0.0, %v1646
          %v1711 = vsub.f32 0.0, %v1647
          %v1712 = vsub.f32 0.0, %v1648
          %v1713 = vsub.f32 0.0, %v1649
          %v1714 = vsub.f32 0.0, %v1650
          %v1715 = vsub.f32 0.0, %v1651
          %v1716 = vsub.f32 0.0, %v1652
          %v1717 = vsub.f32 0.0, %v1653
          %v1718 = vsub.f32 0.0, %v1654
          %v1719 = vsub.f32 0.0, %v1655
          %v1720 = vsub.f32 0.0, %v1656
          %v1721 = vsub.f32 0.0, %v1657
          %v1722 = vsub.f32 0.0, %v1658
          %v1723 = vsub.f32 0.0, %v1659
          %v1724 = vsub.f32 0.0, %v1660
          %v1725 = vsub.f32 0.0, %v1661
          %v1726 = vsub.f32 0.0, %v1662
          %v1727 = vsub.f32 0.0, %v1663
          %v1728 = vsub.f32 0.0, %v1664
          %v1729 = vsub.f32 0.0, %v1665
          %v1730 = vsub.f32 0.0, %v1666
          %v1731 = vsub.f32 0.0, %v1667
          %v1732 = vsub.f32 0.0, %v1668
          %v1733 = vsub.f32 0.0, %v1669
          %v1734 = vsub.f32 0.0, %v1670
          %v1735 = vsub.f32 0.0, %v1671
          %v1736 = vsub.f32 0.0, %v1672
          %v1737 = vsub.f32 0.0, %v1673
          %v1738 = vsub.f32 0.0, %v1674
          %v1739 = vsub.f32 0.0, %v1675
          %v1740 = vsub.f32 0.0, %v1676
          %v1741 = vsub.f32 0.0, %v1677
          %v1742 = vsub.f32 0.0, %v1678
          %v1743 = vsub.f32 0.0, %v1679
          %v1744 = vsub.f32 0.0, %v1680
          %v1745 = vsub.f32 0.0, %v1681
          %v1746 = vsub.f32 0.0, %v1682
          %v1747 = vsub.f32 0.0, %v1683
          %v1748 = vsub.f32 0.0, %v1684
          %v1749 = vsub.f32 0.0, %v1685
          %v1750 = vsub.f32 0.0, %v1686
          %v1751 = vsub.f32 0.0, %v1687
          %v1752 = vsub.f32 0.0, %v1688
          %v1753 = vsub.f32 0.0, %v1689
          %v1754 = vsub.f32 0.0, %v1690
          %v1755 = vlaneseq
          %v1756 = vshrl.u32 %v1755, 7
          %v1757 = vadd.s32 %v1756, 8
          %v1758 = vadd.s32 %v1756, 16
          %v1759 = vadd.s32 %v1756, 24
          %v1760 = vadd.s32 %v1756, 32
          %v1761 = vadd.s32 %v1756, 40
          %v1762 = vadd.s32 %v1756, 48
          %v1763 = vadd.s32 %v1756, 56
          %v1764 = vadd.s32 %v1756, 64
          %v1765 = vadd.s32 %v1756, 72
          %v1766 = vadd.s32 %v1756, 80
          %v1767 = vadd.s32 %v1756, 88
          %v1768 = vadd.s32 %v1756, 96
          %v1769 = vadd.s32 %v1756, 104
          %v1770 = vadd.s32 %v1756, 112
          %v1771 = vadd.s32 %v1756, 120
          %v1772 = vadd.s32 %v1756, 128
          %v1773 = vadd.s32 %v1756, 136
          %v1774 = vadd.s32 %v1756, 144
          %v1775 = vadd.s32 %v1756, 152
          %v1776 = vadd.s32 %v1756, 160
          %v1777 = vadd.s32 %v1756, 168
          %v1778 = vadd.s32 %v1756, 176
          %v1779 = vadd.s32 %v1756, 184
          %v1780 = vadd.s32 %v1756, 192
          %v1781 = vadd.s32 %v1756, 200
          %v1782 = vadd.s32 %v1756, 208
          %v1783 = vadd.s32 %v1756, 216
          %v1784 = vadd.s32 %v1756, 224
          %v1785 = vadd.s32 %v1756, 232
          %v1786 = vadd.s32 %v1756, 240
          %v1787 = vadd.s32 %v1756, 248
          %v1788 = vadd.s32 %v1756, 256
          %v1789 = vadd.s32 %v1756, 264
          %v1790 = vadd.s32 %v1756, 272
          %v1791 = vadd.s32 %v1756, 280
          %v1792 = vadd.s32 %v1756, 288
          %v1793 = vadd.s32 %v1756, 296
          %v1794 = vadd.s32 %v1756, 304
          %v1795 = vadd.s32 %v1756, 312
          %v1796 = vadd.s32 %v1756, 320
          %v1797 = vadd.s32 %v1756, 328
          %v1798 = vadd.s32 %v1756, 336
          %v1799 = vadd.s32 %v1756, 344
          %v1800 = vadd.s32 %v1756, 352
          %v1801 = vadd.s32 %v1756, 360
          %v1802 = vadd.s32 %v1756, 368
          %v1803 = vadd.s32 %v1756, 376
          %v1804 = vadd.s32 %v1756, 384
          %v1805 = vadd.s32 %v1756, 392
          %v1806 = vadd.s32 %v1756, 400
          %v1807 = vadd.s32 %v1756, 408
          %v1808 = vadd.s32 %v1756, 416
          %v1809 = vadd.s32 %v1756, 424
          %v1810 = vadd.s32 %v1756, 432
          %v1811 = vadd.s32 %v1756, 440
          %v1812 = vadd.s32 %v1756, 448
          %v1813 = vadd.s32 %v1756, 456
          %v1814 = vadd.s32 %v1756, 464
          %v1815 = vadd.s32 %v1756, 472
          %v1816 = vadd.s32 %v1756, 480
          %v1817 = vadd.s32 %v1756, 488
          %v1818 = vadd.s32 %v1756, 496
          %v1819 = vadd.s32 %v1756, 504
          %v1820 = vstv 0
          %v1821 = vadd.s32 %v1820, %v1756
          %v1822 = vadd.s32 %v1820, %v1757
          %v1823 = vadd.s32 %v1820, %v1758
          %v1824 = vadd.s32 %v1820, %v1759
          %v1825 = vadd.s32 %v1820, %v1760
          %v1826 = vadd.s32 %v1820, %v1761
          %v1827 = vadd.s32 %v1820, %v1762
          %v1828 = vadd.s32 %v1820, %v1763
          %v1829 = vadd.s32 %v1820, %v1764
          %v1830 = vadd.s32 %v1820, %v1765
          %v1831 = vadd.s32 %v1820, %v1766
          %v1832 = vadd.s32 %v1820, %v1767
          %v1833 = vadd.s32 %v1820, %v1768
          %v1834 = vadd.s32 %v1820, %v1769
          %v1835 = vadd.s32 %v1820, %v1770
          %v1836 = vadd.s32 %v1820, %v1771
          %v1837 = vadd.s32 %v1820, %v1772
          %v1838 = vadd.s32 %v1820, %v1773
          %v1839 = vadd.s32 %v1820, %v1774
          %v1840 = vadd.s32 %v1820, %v1775
          %v1841 = vadd.s32 %v1820, %v1776
          %v1842 = vadd.s32 %v1820, %v1777
          %v1843 = vadd.s32 %v1820, %v1778
          %v1844 = vadd.s32 %v1820, %v1779
          %v1845 = vadd.s32 %v1820, %v1780
          %v1846 = vadd.s32 %v1820, %v1781
          %v1847 = vadd.s32 %v1820, %v1782
          %v1848 = vadd.s32 %v1820, %v1783
          %v1849 = vadd.s32 %v1820, %v1784
          %v1850 = vadd.s32 %v1820, %v1785
          %v1851 = vadd.s32 %v1820, %v1786
          %v1852 = vadd.s32 %v1820, %v1787
          %v1853 = vadd.s32 %v1820, %v1788
          %v1854 = vadd.s32 %v1820, %v1789
          %v1855 = vadd.s32 %v1820, %v1790
          %v1856 = vadd.s32 %v1820, %v1791
          %v1857 = vadd.s32 %v1820, %v1792
          %v1858 = vadd.s32 %v1820, %v1793
          %v1859 = vadd.s32 %v1820, %v1794
          %v1860 = vadd.s32 %v1820, %v1795
          %v1861 = vadd.s32 %v1820, %v1796
          %v1862 = vadd.s32 %v1820, %v1797
          %v1863 = vadd.s32 %v1820, %v1798
          %v1864 = vadd.s32 %v1820, %v1799
          %v1865 = vadd.s32 %v1820, %v1800
          %v1866 = vadd.s32 %v1820, %v1801
          %v1867 = vadd.s32 %v1820, %v1802
          %v1868 = vadd.s32 %v1820, %v1803
          %v1869 = vadd.s32 %v1820, %v1804
          %v1870 = vadd.s32 %v1820, %v1805
          %v1871 = vadd.s32 %v1820, %v1806
          %v1872 = vadd.s32 %v1820, %v1807
          %v1873 = vadd.s32 %v1820, %v1808
          %v1874 = vadd.s32 %v1820, %v1809
          %v1875 = vadd.s32 %v1820, %v1810
          %v1876 = vadd.s32 %v1820, %v1811
          %v1877 = vadd.s32 %v1820, %v1812
          %v1878 = vadd.s32 %v1820, %v1813
          %v1879 = vadd.s32 %v1820, %v1814
          %v1880 = vadd.s32 %v1820, %v1815
          %v1881 = vadd.s32 %v1820, %v1816
          %v1882 = vadd.s32 %v1820, %v1817
          %v1883 = vadd.s32 %v1820, %v1818
          %v1884 = vadd.s32 %v1820, %v1819
          %vm1885 = vcmp.lt.s32.totalorder %v1821, 213
          %vm1886 = vcmp.lt.s32.totalorder %v1822, 213
          %vm1887 = vcmp.lt.s32.totalorder %v1823, 213
          %vm1888 = vcmp.lt.s32.totalorder %v1824, 213
          %vm1889 = vcmp.lt.s32.totalorder %v1825, 213
          %vm1890 = vcmp.lt.s32.totalorder %v1826, 213
          %vm1891 = vcmp.lt.s32.totalorder %v1827, 213
          %vm1892 = vcmp.lt.s32.totalorder %v1828, 213
          %vm1893 = vcmp.lt.s32.totalorder %v1829, 213
          %vm1894 = vcmp.lt.s32.totalorder %v1830, 213
          %vm1895 = vcmp.lt.s32.totalorder %v1831, 213
          %vm1896 = vcmp.lt.s32.totalorder %v1832, 213
          %vm1897 = vcmp.lt.s32.totalorder %v1833, 213
          %vm1898 = vcmp.lt.s32.totalorder %v1834, 213
          %vm1899 = vcmp.lt.s32.totalorder %v1835, 213
          %vm1900 = vcmp.lt.s32.totalorder %v1836, 213
          %vm1901 = vcmp.lt.s32.totalorder %v1837, 213
          %vm1902 = vcmp.lt.s32.totalorder %v1838, 213
          %vm1903 = vcmp.lt.s32.totalorder %v1839, 213
          %vm1904 = vcmp.lt.s32.totalorder %v1840, 213
          %vm1905 = vcmp.lt.s32.totalorder %v1841, 213
          %vm1906 = vcmp.lt.s32.totalorder %v1842, 213
          %vm1907 = vcmp.lt.s32.totalorder %v1843, 213
          %vm1908 = vcmp.lt.s32.totalorder %v1844, 213
          %vm1909 = vcmp.lt.s32.totalorder %v1845, 213
          %vm1910 = vcmp.lt.s32.totalorder %v1846, 213
          %vm1911 = vcmp.lt.s32.totalorder %v1847, 213
          %vm1912 = vcmp.lt.s32.totalorder %v1848, 213
          %vm1913 = vcmp.lt.s32.totalorder %v1849, 213
          %vm1914 = vcmp.lt.s32.totalorder %v1850, 213
          %vm1915 = vcmp.lt.s32.totalorder %v1851, 213
          %vm1916 = vcmp.lt.s32.totalorder %v1852, 213
          %vm1917 = vcmp.lt.s32.totalorder %v1853, 213
          %vm1918 = vcmp.lt.s32.totalorder %v1854, 213
          %vm1919 = vcmp.lt.s32.totalorder %v1855, 213
          %vm1920 = vcmp.lt.s32.totalorder %v1856, 213
          %vm1921 = vcmp.lt.s32.totalorder %v1857, 213
          %vm1922 = vcmp.lt.s32.totalorder %v1858, 213
          %vm1923 = vcmp.lt.s32.totalorder %v1859, 213
          %vm1924 = vcmp.lt.s32.totalorder %v1860, 213
          %vm1925 = vcmp.lt.s32.totalorder %v1861, 213
          %vm1926 = vcmp.lt.s32.totalorder %v1862, 213
          %vm1927 = vcmp.lt.s32.totalorder %v1863, 213
          %vm1928 = vcmp.lt.s32.totalorder %v1864, 213
          %vm1929 = vcmp.lt.s32.totalorder %v1865, 213
          %vm1930 = vcmp.lt.s32.totalorder %v1866, 213
          %vm1931 = vcmp.lt.s32.totalorder %v1867, 213
          %vm1932 = vcmp.lt.s32.totalorder %v1868, 213
          %vm1933 = vcmp.lt.s32.totalorder %v1869, 213
          %vm1934 = vcmp.lt.s32.totalorder %v1870, 213
          %vm1935 = vcmp.lt.s32.totalorder %v1871, 213
          %vm1936 = vcmp.lt.s32.totalorder %v1872, 213
          %vm1937 = vcmp.lt.s32.totalorder %v1873, 213
          %vm1938 = vcmp.lt.s32.totalorder %v1874, 213
          %vm1939 = vcmp.lt.s32.totalorder %v1875, 213
          %vm1940 = vcmp.lt.s32.totalorder %v1876, 213
          %vm1941 = vcmp.lt.s32.totalorder %v1877, 213
          %vm1942 = vcmp.lt.s32.totalorder %v1878, 213
          %vm1943 = vcmp.lt.s32.totalorder %v1879, 213
          %vm1944 = vcmp.lt.s32.totalorder %v1880, 213
          %vm1945 = vcmp.lt.s32.totalorder %v1881, 213
          %vm1946 = vcmp.lt.s32.totalorder %v1882, 213
          %vm1947 = vcmp.lt.s32.totalorder %v1883, 213
          %vm1948 = vcmp.lt.s32.totalorder %v1884, 213
          %v1949 = vsel %vm1885, %v1691, 0.0
          %v1950 = vsel %vm1886, %v1692, 0.0
          %v1951 = vsel %vm1887, %v1693, 0.0
          %v1952 = vsel %vm1888, %v1694, 0.0
          %v1953 = vsel %vm1889, %v1695, 0.0
          %v1954 = vsel %vm1890, %v1696, 0.0
          %v1955 = vsel %vm1891, %v1697, 0.0
          %v1956 = vsel %vm1892, %v1698, 0.0
          %v1957 = vsel %vm1893, %v1699, 0.0
          %v1958 = vsel %vm1894, %v1700, 0.0
          %v1959 = vsel %vm1895, %v1701, 0.0
          %v1960 = vsel %vm1896, %v1702, 0.0
          %v1961 = vsel %vm1897, %v1703, 0.0
          %v1962 = vsel %vm1898, %v1704, 0.0
          %v1963 = vsel %vm1899, %v1705, 0.0
          %v1964 = vsel %vm1900, %v1706, 0.0
          %v1965 = vsel %vm1901, %v1707, 0.0
          %v1966 = vsel %vm1902, %v1708, 0.0
          %v1967 = vsel %vm1903, %v1709, 0.0
          %v1968 = vsel %vm1904, %v1710, 0.0
          %v1969 = vsel %vm1905, %v1711, 0.0
          %v1970 = vsel %vm1906, %v1712, 0.0
          %v1971 = vsel %vm1907, %v1713, 0.0
          %v1972 = vsel %vm1908, %v1714, 0.0
          %v1973 = vsel %vm1909, %v1715, 0.0
          %v1974 = vsel %vm1910, %v1716, 0.0
          %v1975 = vsel %vm1911, %v1717, 0.0
          %v1976 = vsel %vm1912, %v1718, 0.0
          %v1977 = vsel %vm1913, %v1719, 0.0
          %v1978 = vsel %vm1914, %v1720, 0.0
          %v1979 = vsel %vm1915, %v1721, 0.0
          %v1980 = vsel %vm1916, %v1722, 0.0
          %v1981 = vsel %vm1917, %v1723, 0.0
          %v1982 = vsel %vm1918, %v1724, 0.0
          %v1983 = vsel %vm1919, %v1725, 0.0
          %v1984 = vsel %vm1920, %v1726, 0.0
          %v1985 = vsel %vm1921, %v1727, 0.0
          %v1986 = vsel %vm1922, %v1728, 0.0
          %v1987 = vsel %vm1923, %v1729, 0.0
          %v1988 = vsel %vm1924, %v1730, 0.0
          %v1989 = vsel %vm1925, %v1731, 0.0
          %v1990 = vsel %vm1926, %v1732, 0.0
          %v1991 = vsel %vm1927, %v1733, 0.0
          %v1992 = vsel %vm1928, %v1734, 0.0
          %v1993 = vsel %vm1929, %v1735, 0.0
          %v1994 = vsel %vm1930, %v1736, 0.0
          %v1995 = vsel %vm1931, %v1737, 0.0
          %v1996 = vsel %vm1932, %v1738, 0.0
          %v1997 = vsel %vm1933, %v1739, 0.0
          %v1998 = vsel %vm1934, %v1740, 0.0
          %v1999 = vsel %vm1935, %v1741, 0.0
          %v2000 = vsel %vm1936, %v1742, 0.0
          %v2001 = vsel %vm1937, %v1743, 0.0
          %v2002 = vsel %vm1938, %v1744, 0.0
          %v2003 = vsel %vm1939, %v1745, 0.0
          %v2004 = vsel %vm1940, %v1746, 0.0
          %v2005 = vsel %vm1941, %v1747, 0.0
          %v2006 = vsel %vm1942, %v1748, 0.0
          %v2007 = vsel %vm1943, %v1749, 0.0
          %v2008 = vsel %vm1944, %v1750, 0.0
          %v2009 = vsel %vm1945, %v1751, 0.0
          %v2010 = vsel %vm1946, %v1752, 0.0
          %v2011 = vsel %vm1947, %v1753, 0.0
          %v2012 = vsel %vm1948, %v1754, 0.0
          %v2013 = vadd.f32 %v1949, %v1950
          %v2014 = vadd.f32 %v2013, %v1951
          %v2015 = vadd.f32 %v2014, %v1952
          %v2016 = vadd.f32 %v2015, %v1953
          %v2017 = vadd.f32 %v2016, %v1954
          %v2018 = vadd.f32 %v2017, %v1955
          %v2019 = vadd.f32 %v2018, %v1956
          %v2020 = vadd.f32 %v2019, %v1957
          %v2021 = vadd.f32 %v2020, %v1958
          %v2022 = vadd.f32 %v2021, %v1959
          %v2023 = vadd.f32 %v2022, %v1960
          %v2024 = vadd.f32 %v2023, %v1961
          %v2025 = vadd.f32 %v2024, %v1962
          %v2026 = vadd.f32 %v2025, %v1963
          %v2027 = vadd.f32 %v2026, %v1964
          %v2028 = vadd.f32 %v2027, %v1965
          %v2029 = vadd.f32 %v2028, %v1966
          %v2030 = vadd.f32 %v2029, %v1967
          %v2031 = vadd.f32 %v2030, %v1968
          %v2032 = vadd.f32 %v2031, %v1969
          %v2033 = vadd.f32 %v2032, %v1970
          %v2034 = vadd.f32 %v2033, %v1971
          %v2035 = vadd.f32 %v2034, %v1972
          %v2036 = vadd.f32 %v2035, %v1973
          %v2037 = vadd.f32 %v2036, %v1974
          %v2038 = vadd.f32 %v2037, %v1975
          %v2039 = vadd.f32 %v2038, %v1976
          %v2040 = vadd.f32 %v2039, %v1977
          %v2041 = vadd.f32 %v2040, %v1978
          %v2042 = vadd.f32 %v2041, %v1979
          %v2043 = vadd.f32 %v2042, %v1980
          %v2044 = vadd.f32 %v2043, %v1981
          %v2045 = vadd.f32 %v2044, %v1982
          %v2046 = vadd.f32 %v2045, %v1983
          %v2047 = vadd.f32 %v2046, %v1984
          %v2048 = vadd.f32 %v2047, %v1985
          %v2049 = vadd.f32 %v2048, %v1986
          %v2050 = vadd.f32 %v2049, %v1987
          %v2051 = vadd.f32 %v2050, %v1988
          %v2052 = vadd.f32 %v2051, %v1989
          %v2053 = vadd.f32 %v2052, %v1990
          %v2054 = vadd.f32 %v2053, %v1991
          %v2055 = vadd.f32 %v2054, %v1992
          %v2056 = vadd.f32 %v2055, %v1993
          %v2057 = vadd.f32 %v2056, %v1994
          %v2058 = vadd.f32 %v2057, %v1995
          %v2059 = vadd.f32 %v2058, %v1996
          %v2060 = vadd.f32 %v2059, %v1997
          %v2061 = vadd.f32 %v2060, %v1998
          %v2062 = vadd.f32 %v2061, %v1999
          %v2063 = vadd.f32 %v2062, %v2000
          %v2064 = vadd.f32 %v2063, %v2001
          %v2065 = vadd.f32 %v2064, %v2002
          %v2066 = vadd.f32 %v2065, %v2003
          %v2067 = vadd.f32 %v2066, %v2004
          %v2068 = vadd.f32 %v2067, %v2005
          %v2069 = vadd.f32 %v2068, %v2006
          %v2070 = vadd.f32 %v2069, %v2007
          %v2071 = vadd.f32 %v2070, %v2008
          %v2072 = vadd.f32 %v2071, %v2009
          %v2073 = vadd.f32 %v2072, %v2010
          %v2074 = vadd.f32 %v2073, %v2011
          %v2075 = vadd.f32 %v2074, %v2012
          %v2076 = vadd.f32 %v2075, 0.0
          %2077 = vst [vmem:[%s140] sm:$0xff] %v2076
        $region36: #{tpu_custom_call.1} parent=23 // pred_fallthru
          _
        %s2078 = sand.u32 %s52, 1
        %s2079 = scalar_lea.sflag [#allocation4], %s2078
        %s2080 = sand.u32 %s52, 1
        %s2081 = smul.addr %s2080, 8
        %s2082 = scalar_lea.vmem [#allocation5], %s2081
        // Predicated region
        $region37: #{tpu_custom_call.1} parent=23 // pred_check
          %p2083 = pneg %p62
        $region38: #{tpu_custom_call.1} parent=23 // pred_check_branch
          %2085 = sbr.rel (%p2083) target = $region40
        $region39: #{tpu_custom_call.1} parent=23 // pred_region
          %s2087 = ssub.s32 128, 128
          %2088 = vsyncadd %s2079, %s2087
          %s2089 = smul.addr %s18, 128
          %s2090 = scalar_lea.hbm %s1, %s2089
          %s2092 = sshll.u32 %s2082, 4
          %s2093 = int_to_ptr.vmem [resolvable:$true] %s2092
          %2095 = dma.vmem_to_hbm [thread:$0]  %s2093, 128, %s2090, %s2079
        $region40: #{tpu_custom_call.1} parent=23 // pred_fallthru
          _
      $region24: #{tpu_custom_call.1} parent=5 // pred_fallthru
        _
      %p2096 = scmp.le.s32.totalorder 2, %s13
      // Predicated region
      $region41: #{tpu_custom_call.1} parent=5 // pred_check
        %p2097 = pneg %p2096
      $region42: #{tpu_custom_call.1} parent=5 // pred_check_branch
        %2099 = sbr.rel (%p2097) target = $region44
      $region43: #{tpu_custom_call.1} parent=5 // pred_region
        %s2100 = ssub.s32 %s13, 2
        // Predicated region
        $region45: #{tpu_custom_call.1} parent=43 // pred_check
          %p2101 = pneg %p68
        $region46: #{tpu_custom_call.1} parent=43 // pred_check_branch
          %2103 = sbr.rel (%p2101) target = $region48
        $region47: #{tpu_custom_call.1} parent=43 // pred_region
          %s2104 = sand.u32 %s53, 1
          %s2105 = scalar_lea.sflag [#allocation4], %s2104
          %s2106 = sand.u32 %s53, 1
          %s2107 = smul.addr %s2106, 8
          %s2108 = scalar_lea.vmem [#allocation5], %s2107
          %2109 = dma.done %s2105, 128
        $region48: #{tpu_custom_call.1} parent=43 // pred_fallthru
          _
      $region44: #{tpu_custom_call.1} parent=5 // pred_fallthru
        _
    $region6: #{tpu_custom_call.1} parent=1 // loop_footer
      %s17 = sadd.s32 1, %s13
    $region7: #{tpu_custom_call.1} parent=1 // loop_footer_branch
      %12 = sbr.rel target = $region3
    $region8: #{tpu_custom_call.1} parent=1 // loop_exit
      _
    %2110 = vsyncpa [#allocation3], 1
    %s2111 = scalar_lea.sflag [#allocation3], 1
    %2112 = vsyncpa %s2111, 1
    %2113 = vsyncpa [#allocation4], 1
    %s2114 = scalar_lea.sflag [#allocation4], 1
    %2115 = vsyncpa %s2114, 1

</llo_original>
